<compile_context>
chip_gen: v5e
topology: v5e:2x2
jax: 0.10.0
libtpu: 0.0.40
codegen_flags: <defaults>
</compile_context>

<pallas_src>
import jax
import jax.numpy as jnp
import numpy as np
from jax import lax
from jax.experimental import pallas as pl
from jax.experimental.pallas import tpu as pltpu

# ---------------------------------------------------------------------------
# Config (small shapes consistent with the module; defaults scaled down)
# ---------------------------------------------------------------------------
B = 2
IN_CHANNELS = 32
IN_H = 4
IN_W = 4
HW = IN_H * IN_W            # 16
OUT_CHANNELS = 16
OUT_ROWS = 4
MIX_DEPTH = 1
MLP_RATIO = 1
HW_MLP = int(HW * MLP_RATIO)
LN_EPS = 1e-5
NORM_EPS = 1e-12            # F.normalize eps

# One batch element per grid step here (tiny test shapes).  At production use
# 4-8 blocks so the x DMA pipelines under compute and v7x uses both TCs.
BATCH_BLOCKS = 2
B_PER_BLOCK = B // BATCH_BLOCKS

assert B % BATCH_BLOCKS == 0
assert HW_MLP == HW, "operand packing below assumes mlp_ratio == 1 (module default)"


def _vmem_limit_bytes():
    """~85% of physical VMEM: ~108 MiB on v5e/v6e, ~54 MiB on v7x."""
    try:
        return int(pltpu.get_tpu_info().vmem_capacity_bytes * 0.85)
    except Exception:
        return 48 * 1024 * 1024   # conservative: fits every generation


# ---------------------------------------------------------------------------
# Pallas kernel: one batch-block per grid step, batch stacked along M
# ---------------------------------------------------------------------------
def mixvpr_kernel(x_ref,      # (B_PER_BLOCK*C, HW)     bf16 activations, batch stacked on M
                  vecs_ref,   # (MIX_DEPTH, 2, HW)      f32  rows = [b1', b2]  (LN affine folded)
                  wmix_ref,   # (MIX_DEPTH, 2, HW, HW)  bf16 stacked [gamma*W1^T, W2^T]
                  wc_ref,     # (OC, C)                 bf16 channel_proj weight
                  wrt_ref,    # (HW, OR)                bf16 row_proj weight (pre-transposed)
                  bout_ref,   # (OC, OR)                f32  folded channel+row biases
                  o_ref):     # (B_PER_BLOCK, OC, OR)   f32
    x = x_ref[...].astype(jnp.float32)                        # (Bb*C, HW) f32

    # ---- FeatureMixer stack (token-mixing MLP along HW), batch stacked on M ----
    for d in range(MIX_DEPTH):                                 # static depth
        b1 = vecs_ref[d, 0:1, :]                               # (1, HW) f32 (beta folded in)
        b2 = vecs_ref[d, 1:2, :]                               # (1, HW) f32
        w1t = wmix_ref[d, 0]                                   # (HW, HW) bf16 (gamma folded in)
        w2t = wmix_ref[d, 1]                                   # (HW, HW) bf16

        mu = jnp.mean(x, axis=-1, keepdims=True)
        xc = x - mu                                            # hoisted, reused
        var = jnp.mean(xc * xc, axis=-1, keepdims=True)
        xn = xc * lax.rsqrt(var + LN_EPS)                      # LN affine folded into w1t/b1

        h = jnp.dot(xn.astype(jnp.bfloat16), w1t,
                    preferred_element_type=jnp.float32)        # (Bb*C, HW) f32
        h = jnp.maximum(h + b1, 0.0)                           # ReLU (VPU, f32)
        y = jnp.dot(h.astype(jnp.bfloat16), w2t,
                    preferred_element_type=jnp.float32)
        x = x + y + b2                                         # residual (f32)

    # ---- projection epilogue, reassociated: cheap HW->OR contraction first ----
    wrt = wrt_ref[...]                                         # (HW, OR) bf16
    wc = wc_ref[...]                                           # (OC, C)  bf16
    bout = bout_ref[...]                                       # (OC, OR) f32
    xr = jnp.dot(x.astype(jnp.bfloat16), wrt,
                 preferred_element_type=jnp.float32)           # (Bb*C, OR) f32, one stacked dot
    xr_b16 = xr.astype(jnp.bfloat16)

    outs = []
    for b in range(B_PER_BLOCK):                               # static, tiny per-batch dots
        xrb = xr_b16[b * IN_CHANNELS:(b + 1) * IN_CHANNELS, :]  # (C, OR) bf16
        r = jnp.dot(wc, xrb, preferred_element_type=jnp.float32) + bout   # (OC, OR) f32
        # F.normalize: r / max(||r||, eps)  ==  r * rsqrt(max(sum r^2, eps^2))
        inv = lax.rsqrt(jnp.maximum(jnp.sum(r * r), NORM_EPS * NORM_EPS))
        outs.append(r * inv)
    o_ref[...] = jnp.stack(outs, axis=0).astype(o_ref.dtype)   # single store


def mixvpr_forward(x_nchw, params):
    """x_nchw: (B, C, H, W) float32 -> (B, OUT_CHANNELS * OUT_ROWS)."""
    # TODO(synk): the 3-D token-input branch of MixVPR.forward (x[:, 1:] +
    # permute/view using patch_size/image_size) is not implemented; only the
    # 4-D conv-feature path is handled.
    Bx, C, H, W = x_nchw.shape
    hw = H * W
    # Kernel slicing uses the module-level config constants -> enforce match.
    assert (Bx, C, hw) == (B, IN_CHANNELS, HW), "input shape must match kernel config"

    x2 = x_nchw.reshape(Bx * C, hw).astype(jnp.bfloat16)       # bf16 DMA, batch stacked on M

    # ---- operand packing / algebraic folds (wrapper-side, outside the kernel) ----
    # Fold the LayerNorm affine into the first mixer linear:
    #   (xn*gamma + beta) @ W1^T  ==  xn @ (gamma[:,None]*W1^T) + (b1 + beta @ W1^T)
    w1t_f = params["ln_gamma"][:, :, None] * params["w1t"]                     # (D, HW, HW)
    b1_f = params["b1"] + jnp.einsum("dh,dhm->dm", params["ln_beta"], params["w1t"])
    vecs = jnp.stack([b1_f, params["b2"]], axis=1).astype(jnp.float32)         # (D, 2, HW)
    wmix = jnp.stack([w1t_f, params["w2t"]], axis=1).astype(jnp.bfloat16)      # (D, 2, HW, HW)
    wc = params["wc"].astype(jnp.bfloat16)                                     # (OC, C)
    wrt_f32 = params["wrt"]                                                    # (HW, OR) f32
    wrt = wrt_f32.astype(jnp.bfloat16)
    # Fold both projection biases into one additive matrix (order-independent):
    #   r = Wc @ (x @ Wr^T) + bc[:,None] * colsum(Wr^T) + br
    bout = (params["bc"][:, None] * jnp.sum(wrt_f32, axis=0)[None, :]
            + params["br"][None, :]).astype(jnp.float32)                       # (OC, OR)

    def call(single_buffer_weights):
        # Grid-invariant operands -> single-buffered to free VMEM headroom.
        inv = ({"pipeline_mode": pl.Buffered(1)} if single_buffer_weights else {})
        in_specs = [
            pl.BlockSpec((B_PER_BLOCK * C, hw), lambda i: (i, 0)),                  # x (pipelined)
            pl.BlockSpec((MIX_DEPTH, 2, hw), lambda i: (0, 0, 0), **inv),           # packed biases
            pl.BlockSpec((MIX_DEPTH, 2, hw, hw), lambda i: (0, 0, 0, 0), **inv),    # packed mixer W
            pl.BlockSpec((OUT_CHANNELS, C), lambda i: (0, 0), **inv),               # Wc
            pl.BlockSpec((hw, OUT_ROWS), lambda i: (0, 0), **inv),                  # Wr^T
            pl.BlockSpec((OUT_CHANNELS, OUT_ROWS), lambda i: (0, 0), **inv),        # folded bias
        ]
        return pl.pallas_call(
            mixvpr_kernel,
            out_shape=jax.ShapeDtypeStruct((Bx, OUT_CHANNELS, OUT_ROWS), jnp.float32),
            grid=(BATCH_BLOCKS,),
            in_specs=in_specs,
            out_specs=pl.BlockSpec((B_PER_BLOCK, OUT_CHANNELS, OUT_ROWS),
                                   lambda i: (i, 0, 0)),
            compiler_params=pltpu.CompilerParams(
                dimension_semantics=("parallel",),
                vmem_limit_bytes=_vmem_limit_bytes()),
        )(x2, vecs, wmix, wc, wrt, bout)

    try:
        out = call(True)
    except Exception:
        # pipeline_mode=pl.Buffered(1) unsupported on this JAX/Mosaic version:
        # fall back to default double-buffering (correctness unchanged).
        out = call(False)

    return out.reshape(Bx, OUT_CHANNELS * OUT_ROWS)            # free metadata reshape


# ---------------------------------------------------------------------------
# Pure-JAX reference (mirrors the PyTorch forward exactly, all f32)
# ---------------------------------------------------------------------------
def mixvpr_reference(x_nchw, params):
    Bx, C, H, W = x_nchw.shape
    x = x_nchw.reshape(Bx, C, H * W)
    for d in range(MIX_DEPTH):
        mu = jnp.mean(x, axis=-1, keepdims=True)
        var = jnp.mean((x - mu) ** 2, axis=-1, keepdims=True)
        xn = (x - mu) / jnp.sqrt(var + LN_EPS)
        xn = xn * params["ln_gamma"][d] + params["ln_beta"][d]
        h = jnp.maximum(xn @ params["w1t"][d] + params["b1"][d], 0.0)
        y = h @ params["w2t"][d] + params["b2"][d]
        x = x + y
    x = jnp.transpose(x, (0, 2, 1)) @ params["wc"].T + params["bc"]   # (B, HW, OC)
    x = jnp.transpose(x, (0, 2, 1)) @ params["wrt"] + params["br"]    # (B, OC, OR)
    flat = x.reshape(Bx, -1)
    nrm = jnp.sqrt(jnp.sum(flat * flat, axis=-1, keepdims=True))
    return flat / jnp.maximum(nrm, NORM_EPS)


# ---------------------------------------------------------------------------
# Deterministic parameter init (shapes from the module's __init__)
# ---------------------------------------------------------------------------
def init_params(key):
    ks = jax.random.split(key, 8)

    def tn(k, shape, std=0.02):   # approx trunc_normal_(std=0.02)
        return jnp.clip(jax.random.normal(k, shape) * std, -2 * std, 2 * std)

    return {
        # Perturbed from the PyTorch LN default (gamma=1, beta=0) so the
        # wrapper-side LN-affine fold is actually exercised by the check.
        "ln_gamma": (1.0 + 0.1 * jax.random.normal(ks[6], (MIX_DEPTH, HW))).astype(jnp.float32),
        "ln_beta": (0.05 * jax.random.normal(ks[7], (MIX_DEPTH, HW))).astype(jnp.float32),
        # stored pre-transposed so the kernel does x @ W^T as x @ w1t
        "w1t": jnp.transpose(tn(ks[0], (MIX_DEPTH, HW_MLP, HW)), (0, 2, 1)).astype(jnp.float32),
        "b1": jnp.zeros((MIX_DEPTH, HW_MLP), jnp.float32),
        "w2t": jnp.transpose(tn(ks[1], (MIX_DEPTH, HW, HW_MLP)), (0, 2, 1)).astype(jnp.float32),
        "b2": jnp.zeros((MIX_DEPTH, HW), jnp.float32),
        # channel_proj / row_proj: default nn.Linear init ~ U(-1/sqrt(fan_in), 1/sqrt(fan_in))
        "wc": jax.random.uniform(ks[2], (OUT_CHANNELS, IN_CHANNELS),
                                 minval=-1.0 / np.sqrt(IN_CHANNELS),
                                 maxval=1.0 / np.sqrt(IN_CHANNELS)).astype(jnp.float32),
        "bc": jax.random.uniform(ks[3], (OUT_CHANNELS,),
                                 minval=-1.0 / np.sqrt(IN_CHANNELS),
                                 maxval=1.0 / np.sqrt(IN_CHANNELS)).astype(jnp.float32),
        "wrt": jnp.transpose(
            jax.random.uniform(ks[4], (OUT_ROWS, HW),
                               minval=-1.0 / np.sqrt(HW),
                               maxval=1.0 / np.sqrt(HW))).astype(jnp.float32),
        "br": jax.random.uniform(ks[5], (OUT_ROWS,),
                                 minval=-1.0 / np.sqrt(HW),
                                 maxval=1.0 / np.sqrt(HW)).astype(jnp.float32),
    }


if __name__ == "__main__":
    key = jax.random.PRNGKey(0)
    kx, kp = jax.random.split(key)
    x = jax.random.normal(kx, (B, IN_CHANNELS, IN_H, IN_W), dtype=jnp.float32)
    params = init_params(kp)

    out = jax.block_until_ready(mixvpr_forward(x, params))
    ref = jax.block_until_ready(mixvpr_reference(x, params))

    # bf16 x DMA + bf16 MXU inputs (f32 accumulation) -> relaxed tolerance vs f32 ref.
    np.testing.assert_allclose(np.asarray(out), np.asarray(ref), rtol=2e-2, atol=2e-2)
    assert out.shape == (B, OUT_CHANNELS * OUT_ROWS)

    print("KERNEL_OK")
</pallas_src>

<mosaic_0001>
module attributes {stable_mosaic.version = 11 : i64} {
  func.func @mixvpr_kernel(%arg0: i32, %arg1: memref<32x16xbf16, #tpu.memory_space<vmem>>, %arg2: memref<1x2x16xf32, #tpu.memory_space<vmem>>, %arg3: memref<1x2x16x16xbf16, #tpu.memory_space<vmem>>, %arg4: memref<16x32xbf16, #tpu.memory_space<vmem>>, %arg5: memref<16x4xbf16, #tpu.memory_space<vmem>>, %arg6: memref<16x4xf32, #tpu.memory_space<vmem>>, %arg7: memref<1x16x4xf32, #tpu.memory_space<vmem>>) attributes {dimension_semantics = [#tpu.dimension_semantics<parallel>], iteration_bounds = array<i64: 2>, scalar_prefetch = 0 : i64, scratch_operands = 0 : i64, tpu.core_type = #tpu.core_type<tc>, window_params = [{transform_indices = @transform_0, window_bounds = array<i64: 32, 16>}, {pipeline_mode = #tpu.pipeline_mode<synchronous>, transform_indices = @transform_1, window_bounds = array<i64: 1, 2, 16>}, {pipeline_mode = #tpu.pipeline_mode<synchronous>, transform_indices = @transform_2, window_bounds = array<i64: 1, 2, 16, 16>}, {pipeline_mode = #tpu.pipeline_mode<synchronous>, transform_indices = @transform_3, window_bounds = array<i64: 16, 32>}, {pipeline_mode = #tpu.pipeline_mode<synchronous>, transform_indices = @transform_4, window_bounds = array<i64: 16, 4>}, {pipeline_mode = #tpu.pipeline_mode<synchronous>, transform_indices = @transform_5, window_bounds = array<i64: 16, 4>}, {transform_indices = @transform_6, window_bounds = array<i64: 1, 16, 4>}]} {
    %c0 = arith.constant 0 : index
    %c0_0 = arith.constant 0 : index
    %0 = vector.load %arg1[%c0, %c0_0] : memref<32x16xbf16, #tpu.memory_space<vmem>>, vector<32x16xbf16>
    %1 = arith.extf %0 : vector<32x16xbf16> to vector<32x16xf32>
    %c0_1 = arith.constant 0 : index
    %c0_2 = arith.constant 0 : index
    %c0_3 = arith.constant 0 : index
    %2 = vector.load %arg2[%c0_1, %c0_2, %c0_3] : memref<1x2x16xf32, #tpu.memory_space<vmem>>, vector<1x1x16xf32>
    %3 = vector.shape_cast %2 : vector<1x1x16xf32> to vector<1x16xf32>
    %c0_4 = arith.constant 0 : index
    %c1 = arith.constant 1 : index
    %c0_5 = arith.constant 0 : index
    %4 = vector.load %arg2[%c0_4, %c1, %c0_5] : memref<1x2x16xf32, #tpu.memory_space<vmem>>, vector<1x1x16xf32>
    %5 = vector.shape_cast %4 : vector<1x1x16xf32> to vector<1x16xf32>
    %c0_6 = arith.constant 0 : index
    %c0_7 = arith.constant 0 : index
    %c0_8 = arith.constant 0 : index
    %c0_9 = arith.constant 0 : index
    %6 = vector.load %arg3[%c0_6, %c0_7, %c0_8, %c0_9] : memref<1x2x16x16xbf16, #tpu.memory_space<vmem>>, vector<1x1x16x16xbf16>
    %7 = vector.shape_cast %6 : vector<1x1x16x16xbf16> to vector<16x16xbf16>
    %c0_10 = arith.constant 0 : index
    %c1_11 = arith.constant 1 : index
    %c0_12 = arith.constant 0 : index
    %c0_13 = arith.constant 0 : index
    %8 = vector.load %arg3[%c0_10, %c1_11, %c0_12, %c0_13] : memref<1x2x16x16xbf16, #tpu.memory_space<vmem>>, vector<1x1x16x16xbf16>
    %9 = vector.shape_cast %8 : vector<1x1x16x16xbf16> to vector<16x16xbf16>
    %cst = arith.constant dense<0.000000e+00> : vector<32xf32>
    %10 = vector.multi_reduction <add>, %1, %cst [1] : vector<32x16xf32> to vector<32xf32>
    %11 = vector.shape_cast %10 : vector<32xf32> to vector<32x1xf32>
    %cst_14 = arith.constant 1.600000e+01 : f32
    %12 = vector.broadcast %cst_14 : f32 to vector<32x1xf32>
    %13 = arith.divf %11, %12 : vector<32x1xf32>
    %14 = vector.broadcast %13 : vector<32x1xf32> to vector<32x16xf32>
    %15 = arith.subf %1, %14 : vector<32x16xf32>
    %16 = arith.mulf %15, %15 : vector<32x16xf32>
    %cst_15 = arith.constant dense<0.000000e+00> : vector<32xf32>
    %17 = vector.multi_reduction <add>, %16, %cst_15 [1] : vector<32x16xf32> to vector<32xf32>
    %18 = vector.shape_cast %17 : vector<32xf32> to vector<32x1xf32>
    %cst_16 = arith.constant 1.600000e+01 : f32
    %19 = vector.broadcast %cst_16 : f32 to vector<32x1xf32>
    %20 = arith.divf %18, %19 : vector<32x1xf32>
    %cst_17 = arith.constant 9.99999974E-6 : f32
    %21 = vector.broadcast %cst_17 : f32 to vector<32x1xf32>
    %22 = arith.addf %20, %21 : vector<32x1xf32>
    %23 = math.rsqrt %22 : vector<32x1xf32>
    %24 = vector.broadcast %23 : vector<32x1xf32> to vector<32x16xf32>
    %25 = arith.mulf %15, %24 : vector<32x16xf32>
    %26 = arith.truncf %25 : vector<32x16xf32> to vector<32x16xbf16>
    %cst_18 = arith.constant dense<0.000000e+00> : vector<32x16xf32>
    %27 = tpu.matmul %26, %7, %cst_18 {dimension_numbers = #tpu.dot_dimension_numbers<[1], [0], [0], [1], [0, 0, 1, 1], [], []>} : vector<32x16xbf16>, vector<16x16xbf16>, vector<32x16xf32> -> vector<32x16xf32>
    %28 = vector.broadcast %3 : vector<1x16xf32> to vector<32x16xf32>
    %29 = arith.addf %27, %28 : vector<32x16xf32>
    %cst_19 = arith.constant 0.000000e+00 : f32
    %30 = vector.broadcast %cst_19 : f32 to vector<32x16xf32>
    %31 = arith.maximumf %29, %30 : vector<32x16xf32>
    %32 = arith.truncf %31 : vector<32x16xf32> to vector<32x16xbf16>
    %cst_20 = arith.constant dense<0.000000e+00> : vector<32x16xf32>
    %33 = tpu.matmul %32, %9, %cst_20 {dimension_numbers = #tpu.dot_dimension_numbers<[1], [0], [0], [1], [0, 0, 1, 1], [], []>} : vector<32x16xbf16>, vector<16x16xbf16>, vector<32x16xf32> -> vector<32x16xf32>
    %34 = arith.addf %1, %33 : vector<32x16xf32>
    %35 = vector.broadcast %5 : vector<1x16xf32> to vector<32x16xf32>
    %36 = arith.addf %34, %35 : vector<32x16xf32>
    %c0_21 = arith.constant 0 : index
    %c0_22 = arith.constant 0 : index
    %37 = vector.load %arg5[%c0_21, %c0_22] : memref<16x4xbf16, #tpu.memory_space<vmem>>, vector<16x4xbf16>
    %c0_23 = arith.constant 0 : index
    %c0_24 = arith.constant 0 : index
    %38 = vector.load %arg4[%c0_23, %c0_24] : memref<16x32xbf16, #tpu.memory_space<vmem>>, vector<16x32xbf16>
    %c0_25 = arith.constant 0 : index
    %c0_26 = arith.constant 0 : index
    %39 = vector.load %arg6[%c0_25, %c0_26] : memref<16x4xf32, #tpu.memory_space<vmem>>, vector<16x4xf32>
    %40 = arith.truncf %36 : vector<32x16xf32> to vector<32x16xbf16>
    %cst_27 = arith.constant dense<0.000000e+00> : vector<32x4xf32>
    %41 = tpu.matmul %40, %37, %cst_27 {dimension_numbers = #tpu.dot_dimension_numbers<[1], [0], [0], [1], [0, 0, 1, 1], [], []>} : vector<32x16xbf16>, vector<16x4xbf16>, vector<32x4xf32> -> vector<32x4xf32>
    %42 = arith.truncf %41 : vector<32x4xf32> to vector<32x4xbf16>
    %cst_28 = arith.constant dense<0.000000e+00> : vector<16x4xf32>
    %43 = tpu.matmul %38, %42, %cst_28 {dimension_numbers = #tpu.dot_dimension_numbers<[1], [0], [0], [1], [0, 0, 1, 1], [], []>} : vector<16x32xbf16>, vector<32x4xbf16>, vector<16x4xf32> -> vector<16x4xf32>
    %44 = arith.addf %43, %39 : vector<16x4xf32>
    %45 = arith.mulf %44, %44 : vector<16x4xf32>
    %46 = vector.shape_cast %45 : vector<16x4xf32> to vector<1x16x4xf32>
    %cst_29 = arith.constant dense<0.000000e+00> : vector<1xf32>
    %47 = vector.multi_reduction <add>, %46, %cst_29 [1, 2] : vector<1x16x4xf32> to vector<1xf32>
    %48 = vector.shape_cast %47 : vector<1xf32> to vector<1x1x1xf32>
    %49 = vector.extract %48[0, 0, 0] : f32 from vector<1x1x1xf32>
    %cst_30 = arith.constant 1.000000e-24 : f32
    %50 = arith.maximumf %49, %cst_30 : f32
    %51 = math.rsqrt %50 : f32
    %52 = vector.broadcast %51 : f32 to vector<16x4xf32>
    %53 = arith.mulf %44, %52 : vector<16x4xf32>
    %54 = vector.shape_cast %53 : vector<16x4xf32> to vector<1x16x4xf32>
    %c0_31 = arith.constant 0 : index
    %c0_32 = arith.constant 0 : index
    %c0_33 = arith.constant 0 : index
    %55 = vector.load %arg7[%c0_31, %c0_32, %c0_33] : memref<1x16x4xf32, #tpu.memory_space<vmem>>, vector<1x16x4xf32>
    tpu.vector_store %arg7[%c0_31, %c0_32, %c0_33], %54 {strides = array<i32>} : memref<1x16x4xf32, #tpu.memory_space<vmem>>, vector<1x16x4xf32>,
    return
  }
  func.func @transform_0(%arg0: i32) -> (i32, i32) {
    %c0_i32 = arith.constant 0 : i32
    %c0_i32_0 = arith.constant 0 : i32
    return %arg0, %c0_i32 : i32, i32
  }
  func.func @transform_1(%arg0: i32) -> (i32, i32, i32) {
    %c0_i32 = arith.constant 0 : i32
    %c0_i32_0 = arith.constant 0 : i32
    %c0_i32_1 = arith.constant 0 : i32
    %c0_i32_2 = arith.constant 0 : i32
    return %c0_i32, %c0_i32_0, %c0_i32_1 : i32, i32, i32
  }
  func.func @transform_2(%arg0: i32) -> (i32, i32, i32, i32) {
    %c0_i32 = arith.constant 0 : i32
    %c0_i32_0 = arith.constant 0 : i32
    %c0_i32_1 = arith.constant 0 : i32
    %c0_i32_2 = arith.constant 0 : i32
    %c0_i32_3 = arith.constant 0 : i32
    return %c0_i32, %c0_i32_0, %c0_i32_1, %c0_i32_2 : i32, i32, i32, i32
  }
  func.func @transform_3(%arg0: i32) -> (i32, i32) {
    %c0_i32 = arith.constant 0 : i32
    %c0_i32_0 = arith.constant 0 : i32
    %c0_i32_1 = arith.constant 0 : i32
    return %c0_i32, %c0_i32_0 : i32, i32
  }
  func.func @transform_4(%arg0: i32) -> (i32, i32) {
    %c0_i32 = arith.constant 0 : i32
    %c0_i32_0 = arith.constant 0 : i32
    %c0_i32_1 = arith.constant 0 : i32
    return %c0_i32, %c0_i32_0 : i32, i32
  }
  func.func @transform_5(%arg0: i32) -> (i32, i32) {
    %c0_i32 = arith.constant 0 : i32
    %c0_i32_0 = arith.constant 0 : i32
    %c0_i32_1 = arith.constant 0 : i32
    return %c0_i32, %c0_i32_0 : i32, i32
  }
  func.func @transform_6(%arg0: i32) -> (i32, i32, i32) {
    %c0_i32 = arith.constant 0 : i32
    %c0_i32_0 = arith.constant 0 : i32
    %c0_i32_1 = arith.constant 0 : i32
    return %arg0, %c0_i32, %c0_i32_0 : i32, i32, i32
  }
}

module attributes {stable_mosaic.version = 11 : i64} {
  func.func @mixvpr_kernel(%arg0: i32, %arg1: memref<32x16xbf16, #tpu.memory_space<vmem>>, %arg2: memref<1x2x16xf32, #tpu.memory_space<vmem>>, %arg3: memref<1x2x16x16xbf16, #tpu.memory_space<vmem>>, %arg4: memref<16x32xbf16, #tpu.memory_space<vmem>>, %arg5: memref<16x4xbf16, #tpu.memory_space<vmem>>, %arg6: memref<16x4xf32, #tpu.memory_space<vmem>>, %arg7: memref<1x16x4xf32, #tpu.memory_space<vmem>>) attributes {dimension_semantics = [#tpu.dimension_semantics<parallel>], iteration_bounds = array<i64: 2>, scalar_prefetch = 0 : i64, scratch_operands = 0 : i64, tpu.core_type = #tpu.core_type<tc>, window_params = [{transform_indices = @transform_0, window_bounds = array<i64: 32, 16>}, {pipeline_mode = #tpu.pipeline_mode<synchronous>, transform_indices = @transform_1, window_bounds = array<i64: 1, 2, 16>}, {pipeline_mode = #tpu.pipeline_mode<synchronous>, transform_indices = @transform_2, window_bounds = array<i64: 1, 2, 16, 16>}, {pipeline_mode = #tpu.pipeline_mode<synchronous>, transform_indices = @transform_3, window_bounds = array<i64: 16, 32>}, {pipeline_mode = #tpu.pipeline_mode<synchronous>, transform_indices = @transform_4, window_bounds = array<i64: 16, 4>}, {pipeline_mode = #tpu.pipeline_mode<synchronous>, transform_indices = @transform_5, window_bounds = array<i64: 16, 4>}, {transform_indices = @transform_6, window_bounds = array<i64: 1, 16, 4>}]} {
    %c0 = arith.constant 0 : index
    %c0_0 = arith.constant 0 : index
    %0 = vector.load %arg1[%c0, %c0_0] : memref<32x16xbf16, #tpu.memory_space<vmem>>, vector<32x16xbf16>
    %1 = arith.extf %0 : vector<32x16xbf16> to vector<32x16xf32>
    %c0_1 = arith.constant 0 : index
    %c0_2 = arith.constant 0 : index
    %c0_3 = arith.constant 0 : index
    %2 = vector.load %arg2[%c0_1, %c0_2, %c0_3] : memref<1x2x16xf32, #tpu.memory_space<vmem>>, vector<1x1x16xf32>
    %3 = vector.shape_cast %2 : vector<1x1x16xf32> to vector<1x16xf32>
    %c0_4 = arith.constant 0 : index
    %c1 = arith.constant 1 : index
    %c0_5 = arith.constant 0 : index
    %4 = vector.load %arg2[%c0_4, %c1, %c0_5] : memref<1x2x16xf32, #tpu.memory_space<vmem>>, vector<1x1x16xf32>
    %5 = vector.shape_cast %4 : vector<1x1x16xf32> to vector<1x16xf32>
    %c0_6 = arith.constant 0 : index
    %c0_7 = arith.constant 0 : index
    %c0_8 = arith.constant 0 : index
    %c0_9 = arith.constant 0 : index
    %6 = vector.load %arg3[%c0_6, %c0_7, %c0_8, %c0_9] : memref<1x2x16x16xbf16, #tpu.memory_space<vmem>>, vector<1x1x16x16xbf16>
    %7 = vector.shape_cast %6 : vector<1x1x16x16xbf16> to vector<16x16xbf16>
    %c0_10 = arith.constant 0 : index
    %c1_11 = arith.constant 1 : index
    %c0_12 = arith.constant 0 : index
    %c0_13 = arith.constant 0 : index
    %8 = vector.load %arg3[%c0_10, %c1_11, %c0_12, %c0_13] : memref<1x2x16x16xbf16, #tpu.memory_space<vmem>>, vector<1x1x16x16xbf16>
    %9 = vector.shape_cast %8 : vector<1x1x16x16xbf16> to vector<16x16xbf16>
    %cst = arith.constant dense<0.000000e+00> : vector<32xf32>
    %10 = vector.multi_reduction <add>, %1, %cst [1] : vector<32x16xf32> to vector<32xf32>
    %11 = vector.shape_cast %10 : vector<32xf32> to vector<32x1xf32>
    %cst_14 = arith.constant 1.600000e+01 : f32
    %12 = vector.broadcast %cst_14 : f32 to vector<32x1xf32>
    %13 = arith.divf %11, %12 : vector<32x1xf32>
    %14 = vector.broadcast %13 : vector<32x1xf32> to vector<32x16xf32>
    %15 = arith.subf %1, %14 : vector<32x16xf32>
    %16 = arith.mulf %15, %15 : vector<32x16xf32>
    %cst_15 = arith.constant dense<0.000000e+00> : vector<32xf32>
    %17 = vector.multi_reduction <add>, %16, %cst_15 [1] : vector<32x16xf32> to vector<32xf32>
    %18 = vector.shape_cast %17 : vector<32xf32> to vector<32x1xf32>
    %cst_16 = arith.constant 1.600000e+01 : f32
    %19 = vector.broadcast %cst_16 : f32 to vector<32x1xf32>
    %20 = arith.divf %18, %19 : vector<32x1xf32>
    %cst_17 = arith.constant 9.99999974E-6 : f32
    %21 = vector.broadcast %cst_17 : f32 to vector<32x1xf32>
    %22 = arith.addf %20, %21 : vector<32x1xf32>
    %23 = math.rsqrt %22 : vector<32x1xf32>
    %24 = vector.broadcast %23 : vector<32x1xf32> to vector<32x16xf32>
    %25 = arith.mulf %15, %24 : vector<32x16xf32>
    %26 = arith.truncf %25 : vector<32x16xf32> to vector<32x16xbf16>
    %cst_18 = arith.constant dense<0.000000e+00> : vector<32x16xf32>
    %27 = tpu.matmul %26, %7, %cst_18 {dimension_numbers = #tpu.dot_dimension_numbers<[1], [0], [0], [1], [0, 0, 1, 1], [], []>} : vector<32x16xbf16>, vector<16x16xbf16>, vector<32x16xf32> -> vector<32x16xf32>
    %28 = vector.broadcast %3 : vector<1x16xf32> to vector<32x16xf32>
    %29 = arith.addf %27, %28 : vector<32x16xf32>
    %cst_19 = arith.constant 0.000000e+00 : f32
    %30 = vector.broadcast %cst_19 : f32 to vector<32x16xf32>
    %31 = arith.maximumf %29, %30 : vector<32x16xf32>
    %32 = arith.truncf %31 : vector<32x16xf32> to vector<32x16xbf16>
    %cst_20 = arith.constant dense<0.000000e+00> : vector<32x16xf32>
    %33 = tpu.matmul %32, %9, %cst_20 {dimension_numbers = #tpu.dot_dimension_numbers<[1], [0], [0], [1], [0, 0, 1, 1], [], []>} : vector<32x16xbf16>, vector<16x16xbf16>, vector<32x16xf32> -> vector<32x16xf32>
    %34 = arith.addf %1, %33 : vector<32x16xf32>
    %35 = vector.broadcast %5 : vector<1x16xf32> to vector<32x16xf32>
    %36 = arith.addf %34, %35 : vector<32x16xf32>
    %c0_21 = arith.constant 0 : index
    %c0_22 = arith.constant 0 : index
    %37 = vector.load %arg5[%c0_21, %c0_22] : memref<16x4xbf16, #tpu.memory_space<vmem>>, vector<16x4xbf16>
    %c0_23 = arith.constant 0 : index
    %c0_24 = arith.constant 0 : index
    %38 = vector.load %arg4[%c0_23, %c0_24] : memref<16x32xbf16, #tpu.memory_space<vmem>>, vector<16x32xbf16>
    %c0_25 = arith.constant 0 : index
    %c0_26 = arith.constant 0 : index
    %39 = vector.load %arg6[%c0_25, %c0_26] : memref<16x4xf32, #tpu.memory_space<vmem>>, vector<16x4xf32>
    %40 = arith.truncf %36 : vector<32x16xf32> to vector<32x16xbf16>
    %cst_27 = arith.constant dense<0.000000e+00> : vector<32x4xf32>
    %41 = tpu.matmul %40, %37, %cst_27 {dimension_numbers = #tpu.dot_dimension_numbers<[1], [0], [0], [1], [0, 0, 1, 1], [], []>} : vector<32x16xbf16>, vector<16x4xbf16>, vector<32x4xf32> -> vector<32x4xf32>
    %42 = arith.truncf %41 : vector<32x4xf32> to vector<32x4xbf16>
    %cst_28 = arith.constant dense<0.000000e+00> : vector<16x4xf32>
    %43 = tpu.matmul %38, %42, %cst_28 {dimension_numbers = #tpu.dot_dimension_numbers<[1], [0], [0], [1], [0, 0, 1, 1], [], []>} : vector<16x32xbf16>, vector<32x4xbf16>, vector<16x4xf32> -> vector<16x4xf32>
    %44 = arith.addf %43, %39 : vector<16x4xf32>
    %45 = arith.mulf %44, %44 : vector<16x4xf32>
    %46 = vector.shape_cast %45 : vector<16x4xf32> to vector<1x16x4xf32>
    %cst_29 = arith.constant dense<0.000000e+00> : vector<1xf32>
    %47 = vector.multi_reduction <add>, %46, %cst_29 [1, 2] : vector<1x16x4xf32> to vector<1xf32>
    %48 = vector.shape_cast %47 : vector<1xf32> to vector<1x1x1xf32>
    %49 = vector.extract %48[0, 0, 0] : f32 from vector<1x1x1xf32>
    %cst_30 = arith.constant 1.000000e-24 : f32
    %50 = arith.maximumf %49, %cst_30 : f32
    %51 = math.rsqrt %50 : f32
    %52 = vector.broadcast %51 : f32 to vector<16x4xf32>
    %53 = arith.mulf %44, %52 : vector<16x4xf32>
    %54 = vector.shape_cast %53 : vector<16x4xf32> to vector<1x16x4xf32>
    %c0_31 = arith.constant 0 : index
    %c0_32 = arith.constant 0 : index
    %c0_33 = arith.constant 0 : index
    %55 = vector.load %arg7[%c0_31, %c0_32, %c0_33] : memref<1x16x4xf32, #tpu.memory_space<vmem>>, vector<1x16x4xf32>
    tpu.vector_store %arg7[%c0_31, %c0_32, %c0_33], %54 {strides = array<i32>} : memref<1x16x4xf32, #tpu.memory_space<vmem>>, vector<1x16x4xf32>,
    return
  }
  func.func @transform_0(%arg0: i32) -> (i32, i32) {
    %c0_i32 = arith.constant 0 : i32
    %c0_i32_0 = arith.constant 0 : i32
    return %arg0, %c0_i32 : i32, i32
  }
  func.func @transform_1(%arg0: i32) -> (i32, i32, i32) {
    %c0_i32 = arith.constant 0 : i32
    %c0_i32_0 = arith.constant 0 : i32
    %c0_i32_1 = arith.constant 0 : i32
    %c0_i32_2 = arith.constant 0 : i32
    return %c0_i32, %c0_i32_0, %c0_i32_1 : i32, i32, i32
  }
  func.func @transform_2(%arg0: i32) -> (i32, i32, i32, i32) {
    %c0_i32 = arith.constant 0 : i32
    %c0_i32_0 = arith.constant 0 : i32
    %c0_i32_1 = arith.constant 0 : i32
    %c0_i32_2 = arith.constant 0 : i32
    %c0_i32_3 = arith.constant 0 : i32
    return %c0_i32, %c0_i32_0, %c0_i32_1, %c0_i32_2 : i32, i32, i32, i32
  }
  func.func @transform_3(%arg0: i32) -> (i32, i32) {
    %c0_i32 = arith.constant 0 : i32
    %c0_i32_0 = arith.constant 0 : i32
    %c0_i32_1 = arith.constant 0 : i32
    return %c0_i32, %c0_i32_0 : i32, i32
  }
  func.func @transform_4(%arg0: i32) -> (i32, i32) {
    %c0_i32 = arith.constant 0 : i32
    %c0_i32_0 = arith.constant 0 : i32
    %c0_i32_1 = arith.constant 0 : i32
    return %c0_i32, %c0_i32_0 : i32, i32
  }
  func.func @transform_5(%arg0: i32) -> (i32, i32) {
    %c0_i32 = arith.constant 0 : i32
    %c0_i32_0 = arith.constant 0 : i32
    %c0_i32_1 = arith.constant 0 : i32
    return %c0_i32, %c0_i32_0 : i32, i32
  }
  func.func @transform_6(%arg0: i32) -> (i32, i32, i32) {
    %c0_i32 = arith.constant 0 : i32
    %c0_i32_0 = arith.constant 0 : i32
    %c0_i32_1 = arith.constant 0 : i32
    return %arg0, %c0_i32, %c0_i32_0 : i32, i32, i32
  }
}

</mosaic_0001>

<llo_original>
// kernel: tpu_custom_call.1
$region0: #{tpu_custom_call.1}
  #allocation0 [shape = 'u32[]', space=smem, size = 0x4, offset = 0x4, fixed_abs, tag = 'smem constant byte address 0x4 - core index']
  #allocation1 [shape = 'u32[72,128]{1,0:T(1,128)}', space=vmem, size = 0x9000, scoped, tag = 'internal scratch']
  %s0 = inlined_call_operand.vmem [shape: bf16[64,16], index: 0, kind: input, shape index: {}]
  %s1 = inlined_call_operand.vmem [shape: f32[1,2,16], index: 1, kind: input, shape index: {}]
  %s2 = inlined_call_operand.vmem [shape: bf16[1,2,16,16], index: 2, kind: input, shape index: {}]
  %s3 = inlined_call_operand.vmem [shape: bf16[16,32], index: 3, kind: input, shape index: {}]
  %s4 = inlined_call_operand.vmem [shape: bf16[16,4], index: 4, kind: input, shape index: {}]
  %s5 = inlined_call_operand.vmem [shape: f32[16,4], index: 5, kind: input, shape index: {}]
  %s6 = inlined_call_operand.vmem [shape: f32[2,16,4], index: 6, kind: output, shape index: {}]
  %s7 = sld [smem:[#allocation0]]
  $region57: #{tpu_custom_call.1} parent=0
    _
  %s9 = ssub.s32 1, %s7
  %s10 = scalar_select 0, %s9, %s7
  loop: start=0, step=1, limit=4
  $region2: #{tpu_custom_call.1} parent=0 // loop_pre_header
    _
  $region3: #{tpu_custom_call.1} parent=0 // loop_header
    %s12 = sphi 0, %s16
    %p13 = scmp.ge.s32.totalorder %s12, 4
    %s22 = sphi 0, %s24
    %s25 = sphi 0, %s22
    %s26 = sphi 0, %s25
    %s42 = sphi 0, %s26
    %s46 = sphi 0, %s46
    %s48 = sphi 0, %s46
    %s49 = sphi 0, %s48
    %s63 = sphi 0, %s49
    %s67 = sphi 0, %s67
    %s69 = sphi 0, %s67
    %s70 = sphi 0, %s69
    %s84 = sphi 0, %s70
    %s88 = sphi 0, %s88
    %s90 = sphi 0, %s88
    %s91 = sphi 0, %s90
    %s105 = sphi 0, %s91
    %s109 = sphi 0, %s109
    %s111 = sphi 0, %s109
    %s112 = sphi 0, %s111
    %s126 = sphi 0, %s112
    %s130 = sphi 0, %s130
    %s132 = sphi 0, %s130
    %s133 = sphi 0, %s132
    %s147 = sphi 0, %s133
    %s153 = sphi 0, %s155
    %s156 = sphi 0, %s153
    %s157 = sphi 0, %s156
    %s173 = sphi 0, %s157
  $region4: #{tpu_custom_call.1} parent=0 // loop_header_branch
    %15 = sbr.rel (%p13) target = $region8
  $region5: #{tpu_custom_call.1} parent=0 // loop_body
    %s17 = ssub.s32 %s12, 1
    %s18 = ssub.s32 %s12, 2
    %s19 = sadd.s32 %s12, 1
    %s20 = ssub.s32 %s12, %s19
    %p21 = scmp.eq.s32.totalorder %s20, 0
    %s23 = sadd.s32 %s22, 1
    %s24 = scalar_select %p21, %s22, %s23
    %p27 = pneg %p21
    %p28 = scmp.eq.s32.totalorder %s12, 1
    %p29 = por %p27, %p28
    %p30 = scmp.ne.s32.totalorder %s22, %s25
    %p31 = scmp.eq.s32.totalorder %s12, 0
    %p32 = por %p30, %p31
    %p33 = scmp.ne.s32.totalorder %s22, %s25
    %p34 = scmp.eq.s32.totalorder %s17, 1
    %p35 = por %p33, %p34
    %p36 = scmp.ne.s32.totalorder %s25, %s26
    %p37 = scmp.eq.s32.totalorder %s17, 0
    %p38 = por %p36, %p37
    %p39 = scmp.ne.s32.totalorder %s25, %s26
    %p40 = scmp.eq.s32.totalorder %s18, 1
    %p41 = por %p39, %p40
    %p43 = scmp.ne.s32.totalorder %s26, %s42
    %p44 = scmp.eq.s32.totalorder %s18, 0
    %p45 = por %p43, %p44
    %s47 = sadd.s32 %s46, 1
    %p50 = scmp.eq.s32.totalorder %s12, 1
    %p51 = scmp.ne.s32.totalorder %s46, %s48
    %p52 = scmp.eq.s32.totalorder %s12, 0
    %p53 = por %p51, %p52
    %p54 = scmp.ne.s32.totalorder %s46, %s48
    %p55 = scmp.eq.s32.totalorder %s17, 1
    %p56 = por %p54, %p55
    %p57 = scmp.ne.s32.totalorder %s48, %s49
    %p58 = scmp.eq.s32.totalorder %s17, 0
    %p59 = por %p57, %p58
    %p60 = scmp.ne.s32.totalorder %s48, %s49
    %p61 = scmp.eq.s32.totalorder %s18, 1
    %p62 = por %p60, %p61
    %p64 = scmp.ne.s32.totalorder %s49, %s63
    %p65 = scmp.eq.s32.totalorder %s18, 0
    %p66 = por %p64, %p65
    %s68 = sadd.s32 %s67, 1
    %p71 = scmp.eq.s32.totalorder %s12, 1
    %p72 = scmp.ne.s32.totalorder %s67, %s69
    %p73 = scmp.eq.s32.totalorder %s12, 0
    %p74 = por %p72, %p73
    %p75 = scmp.ne.s32.totalorder %s67, %s69
    %p76 = scmp.eq.s32.totalorder %s17, 1
    %p77 = por %p75, %p76
    %p78 = scmp.ne.s32.totalorder %s69, %s70
    %p79 = scmp.eq.s32.totalorder %s17, 0
    %p80 = por %p78, %p79
    %p81 = scmp.ne.s32.totalorder %s69, %s70
    %p82 = scmp.eq.s32.totalorder %s18, 1
    %p83 = por %p81, %p82
    %p85 = scmp.ne.s32.totalorder %s70, %s84
    %p86 = scmp.eq.s32.totalorder %s18, 0
    %p87 = por %p85, %p86
    %s89 = sadd.s32 %s88, 1
    %p92 = scmp.eq.s32.totalorder %s12, 1
    %p93 = scmp.ne.s32.totalorder %s88, %s90
    %p94 = scmp.eq.s32.totalorder %s12, 0
    %p95 = por %p93, %p94
    %p96 = scmp.ne.s32.totalorder %s88, %s90
    %p97 = scmp.eq.s32.totalorder %s17, 1
    %p98 = por %p96, %p97
    %p99 = scmp.ne.s32.totalorder %s90, %s91
    %p100 = scmp.eq.s32.totalorder %s17, 0
    %p101 = por %p99, %p100
    %p102 = scmp.ne.s32.totalorder %s90, %s91
    %p103 = scmp.eq.s32.totalorder %s18, 1
    %p104 = por %p102, %p103
    %p106 = scmp.ne.s32.totalorder %s91, %s105
    %p107 = scmp.eq.s32.totalorder %s18, 0
    %p108 = por %p106, %p107
    %s110 = sadd.s32 %s109, 1
    %p113 = scmp.eq.s32.totalorder %s12, 1
    %p114 = scmp.ne.s32.totalorder %s109, %s111
    %p115 = scmp.eq.s32.totalorder %s12, 0
    %p116 = por %p114, %p115
    %p117 = scmp.ne.s32.totalorder %s109, %s111
    %p118 = scmp.eq.s32.totalorder %s17, 1
    %p119 = por %p117, %p118
    %p120 = scmp.ne.s32.totalorder %s111, %s112
    %p121 = scmp.eq.s32.totalorder %s17, 0
    %p122 = por %p120, %p121
    %p123 = scmp.ne.s32.totalorder %s111, %s112
    %p124 = scmp.eq.s32.totalorder %s18, 1
    %p125 = por %p123, %p124
    %p127 = scmp.ne.s32.totalorder %s112, %s126
    %p128 = scmp.eq.s32.totalorder %s18, 0
    %p129 = por %p127, %p128
    %s131 = sadd.s32 %s130, 1
    %p134 = scmp.eq.s32.totalorder %s12, 1
    %p135 = scmp.ne.s32.totalorder %s130, %s132
    %p136 = scmp.eq.s32.totalorder %s12, 0
    %p137 = por %p135, %p136
    %p138 = scmp.ne.s32.totalorder %s130, %s132
    %p139 = scmp.eq.s32.totalorder %s17, 1
    %p140 = por %p138, %p139
    %p141 = scmp.ne.s32.totalorder %s132, %s133
    %p142 = scmp.eq.s32.totalorder %s17, 0
    %p143 = por %p141, %p142
    %p144 = scmp.ne.s32.totalorder %s132, %s133
    %p145 = scmp.eq.s32.totalorder %s18, 1
    %p146 = por %p144, %p145
    %p148 = scmp.ne.s32.totalorder %s133, %s147
    %p149 = scmp.eq.s32.totalorder %s18, 0
    %p150 = por %p148, %p149
    %s151 = ssub.s32 %s12, %s19
    %p152 = scmp.eq.s32.totalorder %s151, 0
    %s154 = sadd.s32 %s153, 1
    %s155 = scalar_select %p152, %s153, %s154
    %p158 = pneg %p152
    %p159 = scmp.eq.s32.totalorder %s12, 1
    %p160 = por %p158, %p159
    %p161 = scmp.ne.s32.totalorder %s153, %s156
    %p162 = scmp.eq.s32.totalorder %s12, 0
    %p163 = por %p161, %p162
    %p164 = scmp.ne.s32.totalorder %s153, %s156
    %p165 = scmp.eq.s32.totalorder %s17, 1
    %p166 = por %p164, %p165
    %p167 = scmp.ne.s32.totalorder %s156, %s157
    %p168 = scmp.eq.s32.totalorder %s17, 0
    %p169 = por %p167, %p168
    %p170 = scmp.ne.s32.totalorder %s156, %s157
    %p171 = scmp.eq.s32.totalorder %s18, 1
    %p172 = por %p170, %p171
    %p174 = scmp.ne.s32.totalorder %s157, %s173
    %p175 = scmp.eq.s32.totalorder %s18, 0
    %p176 = por %p174, %p175
    %p177 = scmp.le.s32.totalorder 1, %s12
    %p178 = scmp.lt.s32.totalorder %s12, 3
    %p179 = pnand %p177, %p178
    %p180 = pneg %p179
    // Predicated region
    $region9: #{tpu_custom_call.1} parent=5 // pred_check
      _
    $region10: #{tpu_custom_call.1} parent=5 // pred_check_branch
      %182 = sbr.rel (%p179) target = $region12
    $region11: #{tpu_custom_call.1} parent=5 // pred_region
      %s183 = ssub.s32 %s12, 1
      // Predicated region
      $region13: #{tpu_custom_call.1} parent=11 // pred_check
        %p184 = pneg %p59
      $region14: #{tpu_custom_call.1} parent=11 // pred_check_branch
        %186 = sbr.rel (%p184) target = $region16
      $region15: #{tpu_custom_call.1} parent=11 // pred_region
        _
      $region16: #{tpu_custom_call.1} parent=11 // pred_fallthru
        _
      // Predicated region
      $region17: #{tpu_custom_call.1} parent=11 // pred_check
        %p187 = pneg %p80
      $region18: #{tpu_custom_call.1} parent=11 // pred_check_branch
        %189 = sbr.rel (%p187) target = $region20
      $region19: #{tpu_custom_call.1} parent=11 // pred_region
        _
      $region20: #{tpu_custom_call.1} parent=11 // pred_fallthru
        _
      // Predicated region
      $region21: #{tpu_custom_call.1} parent=11 // pred_check
        %p190 = pneg %p101
      $region22: #{tpu_custom_call.1} parent=11 // pred_check_branch
        %192 = sbr.rel (%p190) target = $region24
      $region23: #{tpu_custom_call.1} parent=11 // pred_region
        _
      $region24: #{tpu_custom_call.1} parent=11 // pred_fallthru
        _
      // Predicated region
      $region25: #{tpu_custom_call.1} parent=11 // pred_check
        %p193 = pneg %p122
      $region26: #{tpu_custom_call.1} parent=11 // pred_check_branch
        %195 = sbr.rel (%p193) target = $region28
      $region27: #{tpu_custom_call.1} parent=11 // pred_region
        _
      $region28: #{tpu_custom_call.1} parent=11 // pred_fallthru
        _
      // Predicated region
      $region29: #{tpu_custom_call.1} parent=11 // pred_check
        %p196 = pneg %p143
      $region30: #{tpu_custom_call.1} parent=11 // pred_check_branch
        %198 = sbr.rel (%p196) target = $region32
      $region31: #{tpu_custom_call.1} parent=11 // pred_region
        _
      $region32: #{tpu_custom_call.1} parent=11 // pred_fallthru
        _
    $region12: #{tpu_custom_call.1} parent=5 // pred_fallthru
      _
    %p199 = scmp.lt.s32.totalorder %s12, 2
    // Predicated region
    $region33: #{tpu_custom_call.1} parent=5 // pred_check
      %p200 = pneg %p199
    $region34: #{tpu_custom_call.1} parent=5 // pred_check_branch
      %202 = sbr.rel (%p200) target = $region36
    $region35: #{tpu_custom_call.1} parent=5 // pred_region
      // Predicated region
      $region37: #{tpu_custom_call.1} parent=35 // pred_check
        %p203 = pneg %p32
      $region38: #{tpu_custom_call.1} parent=35 // pred_check_branch
        %205 = sbr.rel (%p203) target = $region40
      $region39: #{tpu_custom_call.1} parent=35 // pred_region
        %s206 = smul.u32 4, %s12
        %p207 = scmp.lt.s32.totalorder %s206, 7
        %s208 = scalar_select %p207, %s206, 7
        %s209 = smul.addr %s208, 4
        %s210 = scalar_lea.vmem %s0, %s209
        %s211 = smul.u32 4, %s12
      $region40: #{tpu_custom_call.1} parent=35 // pred_fallthru
        _
    $region36: #{tpu_custom_call.1} parent=5 // pred_fallthru
      _
    %p212 = scmp.le.s32.totalorder 1, %s12
    %p213 = scmp.lt.s32.totalorder %s12, 3
    %p214 = pnand %p212, %p213
    %p215 = pneg %p214
    // Predicated region
    $region41: #{tpu_custom_call.1} parent=5 // pred_check
      _
    $region42: #{tpu_custom_call.1} parent=5 // pred_check_branch
      %217 = sbr.rel (%p214) target = $region44
    $region43: #{tpu_custom_call.1} parent=5 // pred_region
      %s218 = ssub.s32 %s12, 1
      %s219 = smul.u32 4, %s17
      %p220 = scmp.lt.s32.totalorder %s219, 7
      %s221 = scalar_select %p220, %s219, 7
      %s222 = smul.addr %s221, 4
      %s223 = scalar_lea.vmem %s0, %s222
      %p224 = pneg %p38
      %p225 = pneg %p35
      %p226 = pneg %p59
      %p227 = pneg %p56
      %p228 = pneg %p80
      %p229 = pneg %p77
      %p230 = pneg %p101
      %p231 = pneg %p98
      %p232 = pneg %p122
      %p233 = pneg %p119
      %p234 = pneg %p143
      %p235 = pneg %p140
      %p236 = pneg %p169
      %p237 = pneg %p166
      %p238 = scmp.lt.s32.totalorder %s17, 1
      %s239 = scalar_select %p238, %s17, 1
      %s240 = smul.addr %s239, 2
      %s241 = smul.addr %s240, 8
      %s242 = scalar_lea.vmem %s6, %s241
      %s243 = smul.u32 4, %s17
      %p244 = scmp.lt.s32.totalorder %s243, 7
      %s245 = scalar_select %p244, %s243, 7
      %s246 = smul.addr %s245, 4
      %s247 = scalar_lea.vmem %s0, %s246
      %s248 = smul.u32 4, %s17
      %p249 = scmp.lt.s32.totalorder %s17, 1
      %s250 = scalar_select %p249, %s17, 1
      %s251 = smul.addr %s250, 2
      %s252 = smul.addr %s251, 8
      %s253 = scalar_lea.vmem %s6, %s252
      %v255 = vld [vmem:[%s247] sm:$0xf]
      %v256 = vld [vmem:[%s247 + $0x4] sm:$0xf]
      %v257 = vld [vmem:[%s247 + $0x8] sm:$0xf]
      %v258 = vld [vmem:[%s247 + $0xc] sm:$0xf]
      %v259 = vunpack.c.l.bf16 %v255
      %v260 = vunpack.c.l.bf16 %v256
      %v261 = vunpack.c.l.bf16 %v257
      %v262 = vunpack.c.l.bf16 %v258
      %v263 = vld [vmem:[%s1] sm:$0x1]
      %v264 = vld [vmem:[%s1 + $0x1] sm:$0x1]
      %v265 = vld [vmem:[%s2] sm:$0xf]
      %v266 = vld [vmem:[%s2 + $0x4] sm:$0xf]
      %s267 = scalar_lea.vmem %s2, 8
      %v268 = vld [vmem:[%s267] sm:$0xf]
      %v269 = vld [vmem:[%s267 + $0x4] sm:$0xf]
      %vm270 = vcmask 130048
      %v271 = vsel %vm270, %v259, 0.0
      %272 = vadd.xlane.f32.xlu0 %v271
      %v273 = vpop.xlane.xlu0 %272
      %v274 = vsel %vm270, %v260, 0.0
      %275 = vadd.xlane.f32.xlu0 %v274
      %v276 = vpop.xlane.xlu0 %275
      %v277 = vsel %vm270, %v261, 0.0
      %278 = vadd.xlane.f32.xlu0 %v277
      %v279 = vpop.xlane.xlu0 %278
      %v280 = vsel %vm270, %v262, 0.0
      %281 = vadd.xlane.f32.xlu0 %v280
      %v282 = vpop.xlane.xlu0 %281
      %v283 = vrcp.pop 16.0
      %v284 = vmul.f32 16.0, %v283
      %v285 = vsub.f32 1.0, %v284
      %v286 = vmul.f32 %v283, %v285
      %v287 = vadd.f32 %v283, %v286
      %vm288 = vweird.f32 %v283
      %v289 = vsel %vm288, %v283, %v287
      %v290 = vmul.f32 %v273, %v289
      %v291 = vmul.f32 %v276, %v289
      %v292 = vmul.f32 %v279, %v289
      %v293 = vmul.f32 %v282, %v289
      %v294 = vsub.f32 %v259, %v290
      %v295 = vsub.f32 %v260, %v291
      %v296 = vsub.f32 %v261, %v292
      %v297 = vsub.f32 %v262, %v293
      %v298 = vmul.f32 %v294, %v294
      %v299 = vmul.f32 %v295, %v295
      %v300 = vmul.f32 %v296, %v296
      %v301 = vmul.f32 %v297, %v297
      %v302 = vsel %vm270, %v298, 0.0
      %303 = vadd.xlane.f32.xlu0 %v302
      %v304 = vpop.xlane.xlu0 %303
      %v305 = vsel %vm270, %v299, 0.0
      %306 = vadd.xlane.f32.xlu0 %v305
      %v307 = vpop.xlane.xlu0 %306
      %v308 = vsel %vm270, %v300, 0.0
      %309 = vadd.xlane.f32.xlu0 %v308
      %v310 = vpop.xlane.xlu0 %309
      %v311 = vsel %vm270, %v301, 0.0
      %312 = vadd.xlane.f32.xlu0 %v311
      %v313 = vpop.xlane.xlu0 %312
      %v314 = vmul.f32 %v304, %v289
      %v315 = vmul.f32 %v307, %v289
      %v316 = vmul.f32 %v310, %v289
      %v317 = vmul.f32 %v313, %v289
      %v318 = vadd.f32 %v314, 1e-05
      %v319 = vadd.f32 %v315, 1e-05
      %v320 = vadd.f32 %v316, 1e-05
      %v321 = vadd.f32 %v317, 1e-05
      %v322 = vrsqrt.pop %v318
      %v323 = vmul.f32 %v322, %v318
      %v324 = vmul.f32 %v323, %v322
      %v325 = vmul.f32 0.5, %v324
      %v326 = vsub.f32 1.5, %v325
      %v327 = vmul.f32 %v322, %v326
      %vm328 = vweird.f32 %v318
      %vm329 = vweird.f32 %v322
      %vm330 = vmor %vm328, %vm329
      %v331 = vsel %vm330, %v322, %v327
      %v332 = vrsqrt.pop %v319
      %v333 = vmul.f32 %v332, %v319
      %v334 = vmul.f32 %v333, %v332
      %v335 = vmul.f32 0.5, %v334
      %v336 = vsub.f32 1.5, %v335
      %v337 = vmul.f32 %v332, %v336
      %vm338 = vweird.f32 %v319
      %vm339 = vweird.f32 %v332
      %vm340 = vmor %vm338, %vm339
      %v341 = vsel %vm340, %v332, %v337
      %v342 = vrsqrt.pop %v320
      %v343 = vmul.f32 %v342, %v320
      %v344 = vmul.f32 %v343, %v342
      %v345 = vmul.f32 0.5, %v344
      %v346 = vsub.f32 1.5, %v345
      %v347 = vmul.f32 %v342, %v346
      %vm348 = vweird.f32 %v320
      %vm349 = vweird.f32 %v342
      %vm350 = vmor %vm348, %vm349
      %v351 = vsel %vm350, %v342, %v347
      %v352 = vrsqrt.pop %v321
      %v353 = vmul.f32 %v352, %v321
      %v354 = vmul.f32 %v353, %v352
      %v355 = vmul.f32 0.5, %v354
      %v356 = vsub.f32 1.5, %v355
      %v357 = vmul.f32 %v352, %v356
      %vm358 = vweird.f32 %v321
      %vm359 = vweird.f32 %v352
      %vm360 = vmor %vm358, %vm359
      %v361 = vsel %vm360, %v352, %v357
      %v362 = vmul.f32 %v294, %v331
      %v363 = vmul.f32 %v295, %v341
      %v364 = vmul.f32 %v296, %v351
      %v365 = vmul.f32 %v297, %v361
      %v366 = vpack.c.bf16 %v363, %v362
      %v367 = vpack.c.bf16 %v365, %v364
      %v368 = vperm.slane %v263, 0
      %v371 = vunpack.c.l.b16 %v265
      %v372 = vunpack.c.l.b16 %v266
      %v373 = vpack.c.b16 %v372, %v371
      %v376 = vsel %vm270, %v366, 0
      %v379 = vsel %vm270, %v367, 0
      %381 = vmatpush.bf16.msra.mxu0 0
      %382 = vmatpush.bf16.msra.mxu0 0
      %383 = vmatpush.bf16.msra.mxu0 0
      %384 = vmatpush.bf16.msra.mxu0 0
      %385 = vmatpush.bf16.msra.mxu0 0
      %386 = vmatpush.bf16.msra.mxu0 0
      %387 = vmatpush.bf16.msra.mxu0 0
      %388 = vmatpush.bf16.msra.mxu0 %v373
      %389 = vmatmul.bf16.gmra.mxu0 %v376
      %v390 = vpop.f32.mrf.mxu0
      %v391 = vadd.f32 %v368, %v390
      %v392 = vpop.f32.mrf.mxu0
      %v393 = vadd.f32 %v368, %v392
      %394 = vmatmul.bf16.gmra.mxu0 %v379
      %v395 = vpop.f32.mrf.mxu0
      %v396 = vadd.f32 %v368, %v395
      %v397 = vpop.f32.mrf.mxu0
      %v398 = vadd.f32 %v368, %v397
      %399 = vdwg.mxu0
      %v400 = vmax.f32 %v391, 0.0
      %v401 = vmax.f32 %v393, 0.0
      %v402 = vmax.f32 %v396, 0.0
      %v403 = vmax.f32 %v398, 0.0
      %v404 = vpack.c.bf16 %v401, %v400
      %v405 = vpack.c.bf16 %v403, %v402
      %v408 = vunpack.c.l.b16 %v268
      %v409 = vunpack.c.l.b16 %v269
      %v410 = vpack.c.b16 %v409, %v408
      %v413 = vsel %vm270, %v404, 0
      %v416 = vsel %vm270, %v405, 0
      %418 = vmatpush.bf16.msra.mxu0 0
      %419 = vmatpush.bf16.msra.mxu0 0
      %420 = vmatpush.bf16.msra.mxu0 0
      %421 = vmatpush.bf16.msra.mxu0 0
      %422 = vmatpush.bf16.msra.mxu0 0
      %423 = vmatpush.bf16.msra.mxu0 0
      %424 = vmatpush.bf16.msra.mxu0 0
      %425 = vmatpush.bf16.msra.mxu0 %v410
      %426 = vmatmul.bf16.gmra.mxu0 %v413
      %v427 = vpop.f32.mrf.mxu0
      %v428 = vadd.f32 0.0, %v427
      %v429 = vpop.f32.mrf.mxu0
      %v430 = vadd.f32 0.0, %v429
      %431 = vmatmul.bf16.gmra.mxu0 %v416
      %v432 = vpop.f32.mrf.mxu0
      %v433 = vadd.f32 0.0, %v432
      %v434 = vpop.f32.mrf.mxu0
      %v435 = vadd.f32 0.0, %v434
      %436 = vdwg.mxu0
      %v437 = vadd.f32 %v259, %v428
      %v438 = vadd.f32 %v260, %v430
      %v439 = vadd.f32 %v261, %v433
      %v440 = vadd.f32 %v262, %v435
      %v441 = vperm.slane %v264, 0
      %v442 = vadd.f32 %v437, %v441
      %v443 = vadd.f32 %v438, %v441
      %v444 = vadd.f32 %v439, %v441
      %v445 = vadd.f32 %v440, %v441
      %v446 = vld [vmem:[%s4] sm:$0xf]
      %v447 = vld [vmem:[%s4 + $0x4] sm:$0xf]
      %v448 = vld [vmem:[%s3] sm:$0xf]
      %v449 = vld [vmem:[%s3 + $0x4] sm:$0xf]
      %v450 = vld [vmem:[%s5] sm:$0xff]
      %v451 = vld [vmem:[%s5 + $0x8] sm:$0xff]
      %v452 = vpack.c.bf16 %v443, %v442
      %v453 = vpack.c.bf16 %v445, %v444
      %v456 = vunpack.c.l.b16 %v446
      %v457 = vunpack.c.l.b16 %v447
      %v458 = vpack.c.b16 %v457, %v456
      %v461 = vsel %vm270, %v452, 0
      %v464 = vsel %vm270, %v453, 0
      %466 = vmatpush.bf16.msra.mxu0 0
      %467 = vmatpush.bf16.msra.mxu0 0
      %468 = vmatpush.bf16.msra.mxu0 0
      %469 = vmatpush.bf16.msra.mxu0 0
      %470 = vmatpush.bf16.msra.mxu0 0
      %471 = vmatpush.bf16.msra.mxu0 0
      %472 = vmatpush.bf16.msra.mxu0 0
      %473 = vmatpush.bf16.msra.mxu0 %v458
      %474 = vmatmul.bf16.gmra.mxu0 %v461
      %v475 = vpop.f32.mrf.mxu0
      %v476 = vadd.f32 0.0, %v475
      %v477 = vpop.f32.mrf.mxu0
      %v478 = vadd.f32 0.0, %v477
      %479 = vmatmul.bf16.gmra.mxu0 %v464
      %v480 = vpop.f32.mrf.mxu0
      %v481 = vadd.f32 0.0, %v480
      %v482 = vpop.f32.mrf.mxu0
      %v483 = vadd.f32 0.0, %v482
      %484 = vdwg.mxu0
      %v485 = vpack.c.bf16 %v478, %v476
      %v486 = vpack.c.bf16 %v483, %v481
      %v489 = vunpack.c.l.b16 %v448
      %v490 = vunpack.c.l.b16 %v449
      %v491 = vpack.c.b16 %v490, %v489
      %vm492 = vcmask 261120
      %v494 = vsel %vm492, %v491, 0
      %496 = vmatpush.bf16.msra.mxu0 0
      %497 = vmatpush.bf16.msra.mxu0 0
      %498 = vmatpush.bf16.msra.mxu0 0
      %499 = vmatpush.bf16.msra.mxu0 0
      %500 = vmatpush.bf16.msra.mxu0 0
      %501 = vmatpush.bf16.msra.mxu0 0
      %502 = vmatpush.bf16.msra.mxu0 %v486
      %503 = vmatpush.bf16.msra.mxu0 %v485
      %504 = vmatmul.bf16.gmra.mxu0 %v494
      %v505 = vpop.f32.mrf.mxu0
      %v506 = vadd.f32 %v450, %v505
      %v507 = vpop.f32.mrf.mxu0
      %v508 = vadd.f32 %v451, %v507
      %509 = vdwg.mxu0
      %v510 = vmul.f32 %v506, %v506
      %v511 = vmul.f32 %v508, %v508
      %vm512 = vcmask 31744
      %v513 = vsel %vm512, %v510, 0.0
      %v514 = vsel %vm512, %v511, 0.0
      %v515 = vadd.f32 %v513, %v514
      %516 = vadd.xlane.f32.xlu0 %v515
      %v517 = vpop.xlane.xlu0 %516
      %v518 = vrot.slane %v517, 4
      %v519 = vadd.f32 %v517, %v518
      %v520 = vrot.slane %v519, 2
      %v521 = vadd.f32 %v519, %v520
      %v522 = vrot.slane %v521, 1
      %v523 = vadd.f32 %v521, %v522
      %s524 = vtos %v523
      %s525 = smax.f32 %s524, 1e-24
      %v526 = vstv %s525
      %v527 = vrsqrt.pop %v526
      %v528 = vmul.f32 %v527, %v526
      %v529 = vmul.f32 %v528, %v527
      %v530 = vmul.f32 0.5, %v529
      %v531 = vsub.f32 1.5, %v530
      %v532 = vmul.f32 %v527, %v531
      %vm533 = vweird.f32 %v526
      %vm534 = vweird.f32 %v527
      %vm535 = vmor %vm533, %vm534
      %v536 = vsel %vm535, %v527, %v532
      %s537 = vtos %v536
      %v538 = vstv %s537
      %v539 = vmul.f32 %v506, %v538
      %v540 = vmul.f32 %v508, %v538
      %541 = vst.msk [vmem:[%s253] sm:$0xff] %vm512, %v539
      %542 = vst.msk [vmem:[%s253 + $0x8] sm:$0xff] %vm512, %v540
      %p543 = scmp.lt.s32.totalorder %s17, 1
      %s544 = scalar_select %p543, %s17, 1
      %s545 = smul.addr %s544, 2
      %s546 = smul.addr %s545, 8
      %s547 = scalar_lea.vmem %s6, %s546
      // Predicated region
      $region45: #{tpu_custom_call.1} parent=43 // pred_check
        %p548 = pneg %p166
      $region46: #{tpu_custom_call.1} parent=43 // pred_check_branch
        %550 = sbr.rel (%p548) target = $region48
      $region47: #{tpu_custom_call.1} parent=43 // pred_region
        _
      $region48: #{tpu_custom_call.1} parent=43 // pred_fallthru
        _
    $region44: #{tpu_custom_call.1} parent=5 // pred_fallthru
      _
    %p551 = scmp.le.s32.totalorder 2, %s12
    // Predicated region
    $region49: #{tpu_custom_call.1} parent=5 // pred_check
      %p552 = pneg %p551
    $region50: #{tpu_custom_call.1} parent=5 // pred_check_branch
      %554 = sbr.rel (%p552) target = $region52
    $region51: #{tpu_custom_call.1} parent=5 // pred_region
      %s555 = ssub.s32 %s12, 2
      // Predicated region
      $region53: #{tpu_custom_call.1} parent=51 // pred_check
        %p556 = pneg %p172
      $region54: #{tpu_custom_call.1} parent=51 // pred_check_branch
        %558 = sbr.rel (%p556) target = $region56
      $region55: #{tpu_custom_call.1} parent=51 // pred_region
        %p559 = scmp.lt.s32.totalorder %s18, 1
        %s560 = scalar_select %p559, %s18, 1
        %s561 = smul.addr %s560, 2
        %s562 = smul.addr %s561, 8
        %s563 = scalar_lea.vmem %s6, %s562
      $region56: #{tpu_custom_call.1} parent=51 // pred_fallthru
        _
    $region52: #{tpu_custom_call.1} parent=5 // pred_fallthru
      _
  $region6: #{tpu_custom_call.1} parent=0 // loop_footer
    %s16 = sadd.s32 1, %s12
  $region7: #{tpu_custom_call.1} parent=0 // loop_footer_branch
    %11 = sbr.rel target = $region3
  $region8: #{tpu_custom_call.1} parent=0 // loop_exit
    _

// kernel: tpu_custom_call.1
$region0: #{tpu_custom_call.1}
  #allocation0 [shape = 'u32[]', space=smem, size = 0x4, offset = 0x4, fixed_abs, tag = 'smem constant byte address 0x4 - core index']
  #allocation1 [shape = 'u32[72,128]{1,0:T(1,128)}', space=vmem, size = 0x9000, scoped, tag = 'internal scratch']
  %s0 = inlined_call_operand.vmem [shape: bf16[64,16], index: 0, kind: input, shape index: {}]
  %s1 = inlined_call_operand.vmem [shape: f32[1,2,16], index: 1, kind: input, shape index: {}]
  %s2 = inlined_call_operand.vmem [shape: bf16[1,2,16,16], index: 2, kind: input, shape index: {}]
  %s3 = inlined_call_operand.vmem [shape: bf16[16,32], index: 3, kind: input, shape index: {}]
  %s4 = inlined_call_operand.vmem [shape: bf16[16,4], index: 4, kind: input, shape index: {}]
  %s5 = inlined_call_operand.vmem [shape: f32[16,4], index: 5, kind: input, shape index: {}]
  %s6 = inlined_call_operand.vmem [shape: f32[2,16,4], index: 6, kind: output, shape index: {}]
  %s7 = sld [smem:[#allocation0]]
  $region57: #{tpu_custom_call.1} parent=0
    _
  %s9 = ssub.s32 1, %s7
  %s10 = scalar_select 0, %s9, %s7
  loop: start=0, step=1, limit=4
  $region2: #{tpu_custom_call.1} parent=0 // loop_pre_header
    _
  $region3: #{tpu_custom_call.1} parent=0 // loop_header
    %s12 = sphi 0, %s16
    %p13 = scmp.ge.s32.totalorder %s12, 4
    %s22 = sphi 0, %s24
    %s25 = sphi 0, %s22
    %s26 = sphi 0, %s25
    %s42 = sphi 0, %s26
    %s46 = sphi 0, %s46
    %s48 = sphi 0, %s46
    %s49 = sphi 0, %s48
    %s63 = sphi 0, %s49
    %s67 = sphi 0, %s67
    %s69 = sphi 0, %s67
    %s70 = sphi 0, %s69
    %s84 = sphi 0, %s70
    %s88 = sphi 0, %s88
    %s90 = sphi 0, %s88
    %s91 = sphi 0, %s90
    %s105 = sphi 0, %s91
    %s109 = sphi 0, %s109
    %s111 = sphi 0, %s109
    %s112 = sphi 0, %s111
    %s126 = sphi 0, %s112
    %s130 = sphi 0, %s130
    %s132 = sphi 0, %s130
    %s133 = sphi 0, %s132
    %s147 = sphi 0, %s133
    %s153 = sphi 0, %s155
    %s156 = sphi 0, %s153
    %s157 = sphi 0, %s156
    %s173 = sphi 0, %s157
  $region4: #{tpu_custom_call.1} parent=0 // loop_header_branch
    %15 = sbr.rel (%p13) target = $region8
  $region5: #{tpu_custom_call.1} parent=0 // loop_body
    %s17 = ssub.s32 %s12, 1
    %s18 = ssub.s32 %s12, 2
    %s19 = sadd.s32 %s12, 1
    %s20 = ssub.s32 %s12, %s19
    %p21 = scmp.eq.s32.totalorder %s20, 0
    %s23 = sadd.s32 %s22, 1
    %s24 = scalar_select %p21, %s22, %s23
    %p27 = pneg %p21
    %p28 = scmp.eq.s32.totalorder %s12, 1
    %p29 = por %p27, %p28
    %p30 = scmp.ne.s32.totalorder %s22, %s25
    %p31 = scmp.eq.s32.totalorder %s12, 0
    %p32 = por %p30, %p31
    %p33 = scmp.ne.s32.totalorder %s22, %s25
    %p34 = scmp.eq.s32.totalorder %s17, 1
    %p35 = por %p33, %p34
    %p36 = scmp.ne.s32.totalorder %s25, %s26
    %p37 = scmp.eq.s32.totalorder %s17, 0
    %p38 = por %p36, %p37
    %p39 = scmp.ne.s32.totalorder %s25, %s26
    %p40 = scmp.eq.s32.totalorder %s18, 1
    %p41 = por %p39, %p40
    %p43 = scmp.ne.s32.totalorder %s26, %s42
    %p44 = scmp.eq.s32.totalorder %s18, 0
    %p45 = por %p43, %p44
    %s47 = sadd.s32 %s46, 1
    %p50 = scmp.eq.s32.totalorder %s12, 1
    %p51 = scmp.ne.s32.totalorder %s46, %s48
    %p52 = scmp.eq.s32.totalorder %s12, 0
    %p53 = por %p51, %p52
    %p54 = scmp.ne.s32.totalorder %s46, %s48
    %p55 = scmp.eq.s32.totalorder %s17, 1
    %p56 = por %p54, %p55
    %p57 = scmp.ne.s32.totalorder %s48, %s49
    %p58 = scmp.eq.s32.totalorder %s17, 0
    %p59 = por %p57, %p58
    %p60 = scmp.ne.s32.totalorder %s48, %s49
    %p61 = scmp.eq.s32.totalorder %s18, 1
    %p62 = por %p60, %p61
    %p64 = scmp.ne.s32.totalorder %s49, %s63
    %p65 = scmp.eq.s32.totalorder %s18, 0
    %p66 = por %p64, %p65
    %s68 = sadd.s32 %s67, 1
    %p71 = scmp.eq.s32.totalorder %s12, 1
    %p72 = scmp.ne.s32.totalorder %s67, %s69
    %p73 = scmp.eq.s32.totalorder %s12, 0
    %p74 = por %p72, %p73
    %p75 = scmp.ne.s32.totalorder %s67, %s69
    %p76 = scmp.eq.s32.totalorder %s17, 1
    %p77 = por %p75, %p76
    %p78 = scmp.ne.s32.totalorder %s69, %s70
    %p79 = scmp.eq.s32.totalorder %s17, 0
    %p80 = por %p78, %p79
    %p81 = scmp.ne.s32.totalorder %s69, %s70
    %p82 = scmp.eq.s32.totalorder %s18, 1
    %p83 = por %p81, %p82
    %p85 = scmp.ne.s32.totalorder %s70, %s84
    %p86 = scmp.eq.s32.totalorder %s18, 0
    %p87 = por %p85, %p86
    %s89 = sadd.s32 %s88, 1
    %p92 = scmp.eq.s32.totalorder %s12, 1
    %p93 = scmp.ne.s32.totalorder %s88, %s90
    %p94 = scmp.eq.s32.totalorder %s12, 0
    %p95 = por %p93, %p94
    %p96 = scmp.ne.s32.totalorder %s88, %s90
    %p97 = scmp.eq.s32.totalorder %s17, 1
    %p98 = por %p96, %p97
    %p99 = scmp.ne.s32.totalorder %s90, %s91
    %p100 = scmp.eq.s32.totalorder %s17, 0
    %p101 = por %p99, %p100
    %p102 = scmp.ne.s32.totalorder %s90, %s91
    %p103 = scmp.eq.s32.totalorder %s18, 1
    %p104 = por %p102, %p103
    %p106 = scmp.ne.s32.totalorder %s91, %s105
    %p107 = scmp.eq.s32.totalorder %s18, 0
    %p108 = por %p106, %p107
    %s110 = sadd.s32 %s109, 1
    %p113 = scmp.eq.s32.totalorder %s12, 1
    %p114 = scmp.ne.s32.totalorder %s109, %s111
    %p115 = scmp.eq.s32.totalorder %s12, 0
    %p116 = por %p114, %p115
    %p117 = scmp.ne.s32.totalorder %s109, %s111
    %p118 = scmp.eq.s32.totalorder %s17, 1
    %p119 = por %p117, %p118
    %p120 = scmp.ne.s32.totalorder %s111, %s112
    %p121 = scmp.eq.s32.totalorder %s17, 0
    %p122 = por %p120, %p121
    %p123 = scmp.ne.s32.totalorder %s111, %s112
    %p124 = scmp.eq.s32.totalorder %s18, 1
    %p125 = por %p123, %p124
    %p127 = scmp.ne.s32.totalorder %s112, %s126
    %p128 = scmp.eq.s32.totalorder %s18, 0
    %p129 = por %p127, %p128
    %s131 = sadd.s32 %s130, 1
    %p134 = scmp.eq.s32.totalorder %s12, 1
    %p135 = scmp.ne.s32.totalorder %s130, %s132
    %p136 = scmp.eq.s32.totalorder %s12, 0
    %p137 = por %p135, %p136
    %p138 = scmp.ne.s32.totalorder %s130, %s132
    %p139 = scmp.eq.s32.totalorder %s17, 1
    %p140 = por %p138, %p139
    %p141 = scmp.ne.s32.totalorder %s132, %s133
    %p142 = scmp.eq.s32.totalorder %s17, 0
    %p143 = por %p141, %p142
    %p144 = scmp.ne.s32.totalorder %s132, %s133
    %p145 = scmp.eq.s32.totalorder %s18, 1
    %p146 = por %p144, %p145
    %p148 = scmp.ne.s32.totalorder %s133, %s147
    %p149 = scmp.eq.s32.totalorder %s18, 0
    %p150 = por %p148, %p149
    %s151 = ssub.s32 %s12, %s19
    %p152 = scmp.eq.s32.totalorder %s151, 0
    %s154 = sadd.s32 %s153, 1
    %s155 = scalar_select %p152, %s153, %s154
    %p158 = pneg %p152
    %p159 = scmp.eq.s32.totalorder %s12, 1
    %p160 = por %p158, %p159
    %p161 = scmp.ne.s32.totalorder %s153, %s156
    %p162 = scmp.eq.s32.totalorder %s12, 0
    %p163 = por %p161, %p162
    %p164 = scmp.ne.s32.totalorder %s153, %s156
    %p165 = scmp.eq.s32.totalorder %s17, 1
    %p166 = por %p164, %p165
    %p167 = scmp.ne.s32.totalorder %s156, %s157
    %p168 = scmp.eq.s32.totalorder %s17, 0
    %p169 = por %p167, %p168
    %p170 = scmp.ne.s32.totalorder %s156, %s157
    %p171 = scmp.eq.s32.totalorder %s18, 1
    %p172 = por %p170, %p171
    %p174 = scmp.ne.s32.totalorder %s157, %s173
    %p175 = scmp.eq.s32.totalorder %s18, 0
    %p176 = por %p174, %p175
    %p177 = scmp.le.s32.totalorder 1, %s12
    %p178 = scmp.lt.s32.totalorder %s12, 3
    %p179 = pnand %p177, %p178
    %p180 = pneg %p179
    // Predicated region
    $region9: #{tpu_custom_call.1} parent=5 // pred_check
      _
    $region10: #{tpu_custom_call.1} parent=5 // pred_check_branch
      %182 = sbr.rel (%p179) target = $region12
    $region11: #{tpu_custom_call.1} parent=5 // pred_region
      %s183 = ssub.s32 %s12, 1
      // Predicated region
      $region13: #{tpu_custom_call.1} parent=11 // pred_check
        %p184 = pneg %p59
      $region14: #{tpu_custom_call.1} parent=11 // pred_check_branch
        %186 = sbr.rel (%p184) target = $region16
      $region15: #{tpu_custom_call.1} parent=11 // pred_region
        _
      $region16: #{tpu_custom_call.1} parent=11 // pred_fallthru
        _
      // Predicated region
      $region17: #{tpu_custom_call.1} parent=11 // pred_check
        %p187 = pneg %p80
      $region18: #{tpu_custom_call.1} parent=11 // pred_check_branch
        %189 = sbr.rel (%p187) target = $region20
      $region19: #{tpu_custom_call.1} parent=11 // pred_region
        _
      $region20: #{tpu_custom_call.1} parent=11 // pred_fallthru
        _
      // Predicated region
      $region21: #{tpu_custom_call.1} parent=11 // pred_check
        %p190 = pneg %p101
      $region22: #{tpu_custom_call.1} parent=11 // pred_check_branch
        %192 = sbr.rel (%p190) target = $region24
      $region23: #{tpu_custom_call.1} parent=11 // pred_region
        _
      $region24: #{tpu_custom_call.1} parent=11 // pred_fallthru
        _
      // Predicated region
      $region25: #{tpu_custom_call.1} parent=11 // pred_check
        %p193 = pneg %p122
      $region26: #{tpu_custom_call.1} parent=11 // pred_check_branch
        %195 = sbr.rel (%p193) target = $region28
      $region27: #{tpu_custom_call.1} parent=11 // pred_region
        _
      $region28: #{tpu_custom_call.1} parent=11 // pred_fallthru
        _
      // Predicated region
      $region29: #{tpu_custom_call.1} parent=11 // pred_check
        %p196 = pneg %p143
      $region30: #{tpu_custom_call.1} parent=11 // pred_check_branch
        %198 = sbr.rel (%p196) target = $region32
      $region31: #{tpu_custom_call.1} parent=11 // pred_region
        _
      $region32: #{tpu_custom_call.1} parent=11 // pred_fallthru
        _
    $region12: #{tpu_custom_call.1} parent=5 // pred_fallthru
      _
    %p199 = scmp.lt.s32.totalorder %s12, 2
    // Predicated region
    $region33: #{tpu_custom_call.1} parent=5 // pred_check
      %p200 = pneg %p199
    $region34: #{tpu_custom_call.1} parent=5 // pred_check_branch
      %202 = sbr.rel (%p200) target = $region36
    $region35: #{tpu_custom_call.1} parent=5 // pred_region
      // Predicated region
      $region37: #{tpu_custom_call.1} parent=35 // pred_check
        %p203 = pneg %p32
      $region38: #{tpu_custom_call.1} parent=35 // pred_check_branch
        %205 = sbr.rel (%p203) target = $region40
      $region39: #{tpu_custom_call.1} parent=35 // pred_region
        %s206 = smul.u32 4, %s12
        %p207 = scmp.lt.s32.totalorder %s206, 7
        %s208 = scalar_select %p207, %s206, 7
        %s209 = smul.addr %s208, 4
        %s210 = scalar_lea.vmem %s0, %s209
        %s211 = smul.u32 4, %s12
      $region40: #{tpu_custom_call.1} parent=35 // pred_fallthru
        _
    $region36: #{tpu_custom_call.1} parent=5 // pred_fallthru
      _
    %p212 = scmp.le.s32.totalorder 1, %s12
    %p213 = scmp.lt.s32.totalorder %s12, 3
    %p214 = pnand %p212, %p213
    %p215 = pneg %p214
    // Predicated region
    $region41: #{tpu_custom_call.1} parent=5 // pred_check
      _
    $region42: #{tpu_custom_call.1} parent=5 // pred_check_branch
      %217 = sbr.rel (%p214) target = $region44
    $region43: #{tpu_custom_call.1} parent=5 // pred_region
      %s218 = ssub.s32 %s12, 1
      %s219 = smul.u32 4, %s17
      %p220 = scmp.lt.s32.totalorder %s219, 7
      %s221 = scalar_select %p220, %s219, 7
      %s222 = smul.addr %s221, 4
      %s223 = scalar_lea.vmem %s0, %s222
      %p224 = pneg %p38
      %p225 = pneg %p35
      %p226 = pneg %p59
      %p227 = pneg %p56
      %p228 = pneg %p80
      %p229 = pneg %p77
      %p230 = pneg %p101
      %p231 = pneg %p98
      %p232 = pneg %p122
      %p233 = pneg %p119
      %p234 = pneg %p143
      %p235 = pneg %p140
      %p236 = pneg %p169
      %p237 = pneg %p166
      %p238 = scmp.lt.s32.totalorder %s17, 1
      %s239 = scalar_select %p238, %s17, 1
      %s240 = smul.addr %s239, 2
      %s241 = smul.addr %s240, 8
      %s242 = scalar_lea.vmem %s6, %s241
      %s243 = smul.u32 4, %s17
      %p244 = scmp.lt.s32.totalorder %s243, 7
      %s245 = scalar_select %p244, %s243, 7
      %s246 = smul.addr %s245, 4
      %s247 = scalar_lea.vmem %s0, %s246
      %s248 = smul.u32 4, %s17
      %p249 = scmp.lt.s32.totalorder %s17, 1
      %s250 = scalar_select %p249, %s17, 1
      %s251 = smul.addr %s250, 2
      %s252 = smul.addr %s251, 8
      %s253 = scalar_lea.vmem %s6, %s252
      %v255 = vld [vmem:[%s247] sm:$0xf]
      %v256 = vld [vmem:[%s247 + $0x4] sm:$0xf]
      %v257 = vld [vmem:[%s247 + $0x8] sm:$0xf]
      %v258 = vld [vmem:[%s247 + $0xc] sm:$0xf]
      %v259 = vunpack.c.l.bf16 %v255
      %v260 = vunpack.c.l.bf16 %v256
      %v261 = vunpack.c.l.bf16 %v257
      %v262 = vunpack.c.l.bf16 %v258
      %v263 = vld [vmem:[%s1] sm:$0x1]
      %v264 = vld [vmem:[%s1 + $0x1] sm:$0x1]
      %v265 = vld [vmem:[%s2] sm:$0xf]
      %v266 = vld [vmem:[%s2 + $0x4] sm:$0xf]
      %s267 = scalar_lea.vmem %s2, 8
      %v268 = vld [vmem:[%s267] sm:$0xf]
      %v269 = vld [vmem:[%s267 + $0x4] sm:$0xf]
      %vm270 = vcmask 130048
      %v271 = vsel %vm270, %v259, 0.0
      %272 = vadd.xlane.f32.xlu0 %v271
      %v273 = vpop.xlane.xlu0 %272
      %v274 = vsel %vm270, %v260, 0.0
      %275 = vadd.xlane.f32.xlu0 %v274
      %v276 = vpop.xlane.xlu0 %275
      %v277 = vsel %vm270, %v261, 0.0
      %278 = vadd.xlane.f32.xlu0 %v277
      %v279 = vpop.xlane.xlu0 %278
      %v280 = vsel %vm270, %v262, 0.0
      %281 = vadd.xlane.f32.xlu0 %v280
      %v282 = vpop.xlane.xlu0 %281
      %v283 = vrcp.pop 16.0
      %v284 = vmul.f32 16.0, %v283
      %v285 = vsub.f32 1.0, %v284
      %v286 = vmul.f32 %v283, %v285
      %v287 = vadd.f32 %v283, %v286
      %vm288 = vweird.f32 %v283
      %v289 = vsel %vm288, %v283, %v287
      %v290 = vmul.f32 %v273, %v289
      %v291 = vmul.f32 %v276, %v289
      %v292 = vmul.f32 %v279, %v289
      %v293 = vmul.f32 %v282, %v289
      %v294 = vsub.f32 %v259, %v290
      %v295 = vsub.f32 %v260, %v291
      %v296 = vsub.f32 %v261, %v292
      %v297 = vsub.f32 %v262, %v293
      %v298 = vmul.f32 %v294, %v294
      %v299 = vmul.f32 %v295, %v295
      %v300 = vmul.f32 %v296, %v296
      %v301 = vmul.f32 %v297, %v297
      %v302 = vsel %vm270, %v298, 0.0
      %303 = vadd.xlane.f32.xlu0 %v302
      %v304 = vpop.xlane.xlu0 %303
      %v305 = vsel %vm270, %v299, 0.0
      %306 = vadd.xlane.f32.xlu0 %v305
      %v307 = vpop.xlane.xlu0 %306
      %v308 = vsel %vm270, %v300, 0.0
      %309 = vadd.xlane.f32.xlu0 %v308
      %v310 = vpop.xlane.xlu0 %309
      %v311 = vsel %vm270, %v301, 0.0
      %312 = vadd.xlane.f32.xlu0 %v311
      %v313 = vpop.xlane.xlu0 %312
      %v314 = vmul.f32 %v304, %v289
      %v315 = vmul.f32 %v307, %v289
      %v316 = vmul.f32 %v310, %v289
      %v317 = vmul.f32 %v313, %v289
      %v318 = vadd.f32 %v314, 1e-05
      %v319 = vadd.f32 %v315, 1e-05
      %v320 = vadd.f32 %v316, 1e-05
      %v321 = vadd.f32 %v317, 1e-05
      %v322 = vrsqrt.pop %v318
      %v323 = vmul.f32 %v322, %v318
      %v324 = vmul.f32 %v323, %v322
      %v325 = vmul.f32 0.5, %v324
      %v326 = vsub.f32 1.5, %v325
      %v327 = vmul.f32 %v322, %v326
      %vm328 = vweird.f32 %v318
      %vm329 = vweird.f32 %v322
      %vm330 = vmor %vm328, %vm329
      %v331 = vsel %vm330, %v322, %v327
      %v332 = vrsqrt.pop %v319
      %v333 = vmul.f32 %v332, %v319
      %v334 = vmul.f32 %v333, %v332
      %v335 = vmul.f32 0.5, %v334
      %v336 = vsub.f32 1.5, %v335
      %v337 = vmul.f32 %v332, %v336
      %vm338 = vweird.f32 %v319
      %vm339 = vweird.f32 %v332
      %vm340 = vmor %vm338, %vm339
      %v341 = vsel %vm340, %v332, %v337
      %v342 = vrsqrt.pop %v320
      %v343 = vmul.f32 %v342, %v320
      %v344 = vmul.f32 %v343, %v342
      %v345 = vmul.f32 0.5, %v344
      %v346 = vsub.f32 1.5, %v345
      %v347 = vmul.f32 %v342, %v346
      %vm348 = vweird.f32 %v320
      %vm349 = vweird.f32 %v342
      %vm350 = vmor %vm348, %vm349
      %v351 = vsel %vm350, %v342, %v347
      %v352 = vrsqrt.pop %v321
      %v353 = vmul.f32 %v352, %v321
      %v354 = vmul.f32 %v353, %v352
      %v355 = vmul.f32 0.5, %v354
      %v356 = vsub.f32 1.5, %v355
      %v357 = vmul.f32 %v352, %v356
      %vm358 = vweird.f32 %v321
      %vm359 = vweird.f32 %v352
      %vm360 = vmor %vm358, %vm359
      %v361 = vsel %vm360, %v352, %v357
      %v362 = vmul.f32 %v294, %v331
      %v363 = vmul.f32 %v295, %v341
      %v364 = vmul.f32 %v296, %v351
      %v365 = vmul.f32 %v297, %v361
      %v366 = vpack.c.bf16 %v363, %v362
      %v367 = vpack.c.bf16 %v365, %v364
      %v368 = vperm.slane %v263, 0
      %v371 = vunpack.c.l.b16 %v265
      %v372 = vunpack.c.l.b16 %v266
      %v373 = vpack.c.b16 %v372, %v371
      %v376 = vsel %vm270, %v366, 0
      %v379 = vsel %vm270, %v367, 0
      %381 = vmatpush.bf16.msra.mxu0 0
      %382 = vmatpush.bf16.msra.mxu0 0
      %383 = vmatpush.bf16.msra.mxu0 0
      %384 = vmatpush.bf16.msra.mxu0 0
      %385 = vmatpush.bf16.msra.mxu0 0
      %386 = vmatpush.bf16.msra.mxu0 0
      %387 = vmatpush.bf16.msra.mxu0 0
      %388 = vmatpush.bf16.msra.mxu0 %v373
      %389 = vmatmul.bf16.gmra.mxu0 %v376
      %v390 = vpop.f32.mrf.mxu0
      %v391 = vadd.f32 %v368, %v390
      %v392 = vpop.f32.mrf.mxu0
      %v393 = vadd.f32 %v368, %v392
      %394 = vmatmul.bf16.gmra.mxu0 %v379
      %v395 = vpop.f32.mrf.mxu0
      %v396 = vadd.f32 %v368, %v395
      %v397 = vpop.f32.mrf.mxu0
      %v398 = vadd.f32 %v368, %v397
      %399 = vdwg.mxu0
      %v400 = vmax.f32 %v391, 0.0
      %v401 = vmax.f32 %v393, 0.0
      %v402 = vmax.f32 %v396, 0.0
      %v403 = vmax.f32 %v398, 0.0
      %v404 = vpack.c.bf16 %v401, %v400
      %v405 = vpack.c.bf16 %v403, %v402
      %v408 = vunpack.c.l.b16 %v268
      %v409 = vunpack.c.l.b16 %v269
      %v410 = vpack.c.b16 %v409, %v408
      %v413 = vsel %vm270, %v404, 0
      %v416 = vsel %vm270, %v405, 0
      %418 = vmatpush.bf16.msra.mxu0 0
      %419 = vmatpush.bf16.msra.mxu0 0
      %420 = vmatpush.bf16.msra.mxu0 0
      %421 = vmatpush.bf16.msra.mxu0 0
      %422 = vmatpush.bf16.msra.mxu0 0
      %423 = vmatpush.bf16.msra.mxu0 0
      %424 = vmatpush.bf16.msra.mxu0 0
      %425 = vmatpush.bf16.msra.mxu0 %v410
      %426 = vmatmul.bf16.gmra.mxu0 %v413
      %v427 = vpop.f32.mrf.mxu0
      %v428 = vadd.f32 0.0, %v427
      %v429 = vpop.f32.mrf.mxu0
      %v430 = vadd.f32 0.0, %v429
      %431 = vmatmul.bf16.gmra.mxu0 %v416
      %v432 = vpop.f32.mrf.mxu0
      %v433 = vadd.f32 0.0, %v432
      %v434 = vpop.f32.mrf.mxu0
      %v435 = vadd.f32 0.0, %v434
      %436 = vdwg.mxu0
      %v437 = vadd.f32 %v259, %v428
      %v438 = vadd.f32 %v260, %v430
      %v439 = vadd.f32 %v261, %v433
      %v440 = vadd.f32 %v262, %v435
      %v441 = vperm.slane %v264, 0
      %v442 = vadd.f32 %v437, %v441
      %v443 = vadd.f32 %v438, %v441
      %v444 = vadd.f32 %v439, %v441
      %v445 = vadd.f32 %v440, %v441
      %v446 = vld [vmem:[%s4] sm:$0xf]
      %v447 = vld [vmem:[%s4 + $0x4] sm:$0xf]
      %v448 = vld [vmem:[%s3] sm:$0xf]
      %v449 = vld [vmem:[%s3 + $0x4] sm:$0xf]
      %v450 = vld [vmem:[%s5] sm:$0xff]
      %v451 = vld [vmem:[%s5 + $0x8] sm:$0xff]
      %v452 = vpack.c.bf16 %v443, %v442
      %v453 = vpack.c.bf16 %v445, %v444
      %v456 = vunpack.c.l.b16 %v446
      %v457 = vunpack.c.l.b16 %v447
      %v458 = vpack.c.b16 %v457, %v456
      %v461 = vsel %vm270, %v452, 0
      %v464 = vsel %vm270, %v453, 0
      %466 = vmatpush.bf16.msra.mxu0 0
      %467 = vmatpush.bf16.msra.mxu0 0
      %468 = vmatpush.bf16.msra.mxu0 0
      %469 = vmatpush.bf16.msra.mxu0 0
      %470 = vmatpush.bf16.msra.mxu0 0
      %471 = vmatpush.bf16.msra.mxu0 0
      %472 = vmatpush.bf16.msra.mxu0 0
      %473 = vmatpush.bf16.msra.mxu0 %v458
      %474 = vmatmul.bf16.gmra.mxu0 %v461
      %v475 = vpop.f32.mrf.mxu0
      %v476 = vadd.f32 0.0, %v475
      %v477 = vpop.f32.mrf.mxu0
      %v478 = vadd.f32 0.0, %v477
      %479 = vmatmul.bf16.gmra.mxu0 %v464
      %v480 = vpop.f32.mrf.mxu0
      %v481 = vadd.f32 0.0, %v480
      %v482 = vpop.f32.mrf.mxu0
      %v483 = vadd.f32 0.0, %v482
      %484 = vdwg.mxu0
      %v485 = vpack.c.bf16 %v478, %v476
      %v486 = vpack.c.bf16 %v483, %v481
      %v489 = vunpack.c.l.b16 %v448
      %v490 = vunpack.c.l.b16 %v449
      %v491 = vpack.c.b16 %v490, %v489
      %vm492 = vcmask 261120
      %v494 = vsel %vm492, %v491, 0
      %496 = vmatpush.bf16.msra.mxu0 0
      %497 = vmatpush.bf16.msra.mxu0 0
      %498 = vmatpush.bf16.msra.mxu0 0
      %499 = vmatpush.bf16.msra.mxu0 0
      %500 = vmatpush.bf16.msra.mxu0 0
      %501 = vmatpush.bf16.msra.mxu0 0
      %502 = vmatpush.bf16.msra.mxu0 %v486
      %503 = vmatpush.bf16.msra.mxu0 %v485
      %504 = vmatmul.bf16.gmra.mxu0 %v494
      %v505 = vpop.f32.mrf.mxu0
      %v506 = vadd.f32 %v450, %v505
      %v507 = vpop.f32.mrf.mxu0
      %v508 = vadd.f32 %v451, %v507
      %509 = vdwg.mxu0
      %v510 = vmul.f32 %v506, %v506
      %v511 = vmul.f32 %v508, %v508
      %vm512 = vcmask 31744
      %v513 = vsel %vm512, %v510, 0.0
      %v514 = vsel %vm512, %v511, 0.0
      %v515 = vadd.f32 %v513, %v514
      %516 = vadd.xlane.f32.xlu0 %v515
      %v517 = vpop.xlane.xlu0 %516
      %v518 = vrot.slane %v517, 4
      %v519 = vadd.f32 %v517, %v518
      %v520 = vrot.slane %v519, 2
      %v521 = vadd.f32 %v519, %v520
      %v522 = vrot.slane %v521, 1
      %v523 = vadd.f32 %v521, %v522
      %s524 = vtos %v523
      %s525 = smax.f32 %s524, 1e-24
      %v526 = vstv %s525
      %v527 = vrsqrt.pop %v526
      %v528 = vmul.f32 %v527, %v526
      %v529 = vmul.f32 %v528, %v527
      %v530 = vmul.f32 0.5, %v529
      %v531 = vsub.f32 1.5, %v530
      %v532 = vmul.f32 %v527, %v531
      %vm533 = vweird.f32 %v526
      %vm534 = vweird.f32 %v527
      %vm535 = vmor %vm533, %vm534
      %v536 = vsel %vm535, %v527, %v532
      %s537 = vtos %v536
      %v538 = vstv %s537
      %v539 = vmul.f32 %v506, %v538
      %v540 = vmul.f32 %v508, %v538
      %541 = vst.msk [vmem:[%s253] sm:$0xff] %vm512, %v539
      %542 = vst.msk [vmem:[%s253 + $0x8] sm:$0xff] %vm512, %v540
      %p543 = scmp.lt.s32.totalorder %s17, 1
      %s544 = scalar_select %p543, %s17, 1
      %s545 = smul.addr %s544, 2
      %s546 = smul.addr %s545, 8
      %s547 = scalar_lea.vmem %s6, %s546
      // Predicated region
      $region45: #{tpu_custom_call.1} parent=43 // pred_check
        %p548 = pneg %p166
      $region46: #{tpu_custom_call.1} parent=43 // pred_check_branch
        %550 = sbr.rel (%p548) target = $region48
      $region47: #{tpu_custom_call.1} parent=43 // pred_region
        _
      $region48: #{tpu_custom_call.1} parent=43 // pred_fallthru
        _
    $region44: #{tpu_custom_call.1} parent=5 // pred_fallthru
      _
    %p551 = scmp.le.s32.totalorder 2, %s12
    // Predicated region
    $region49: #{tpu_custom_call.1} parent=5 // pred_check
      %p552 = pneg %p551
    $region50: #{tpu_custom_call.1} parent=5 // pred_check_branch
      %554 = sbr.rel (%p552) target = $region52
    $region51: #{tpu_custom_call.1} parent=5 // pred_region
      %s555 = ssub.s32 %s12, 2
      // Predicated region
      $region53: #{tpu_custom_call.1} parent=51 // pred_check
        %p556 = pneg %p172
      $region54: #{tpu_custom_call.1} parent=51 // pred_check_branch
        %558 = sbr.rel (%p556) target = $region56
      $region55: #{tpu_custom_call.1} parent=51 // pred_region
        %p559 = scmp.lt.s32.totalorder %s18, 1
        %s560 = scalar_select %p559, %s18, 1
        %s561 = smul.addr %s560, 2
        %s562 = smul.addr %s561, 8
        %s563 = scalar_lea.vmem %s6, %s562
      $region56: #{tpu_custom_call.1} parent=51 // pred_fallthru
        _
    $region52: #{tpu_custom_call.1} parent=5 // pred_fallthru
      _
  $region6: #{tpu_custom_call.1} parent=0 // loop_footer
    %s16 = sadd.s32 1, %s12
  $region7: #{tpu_custom_call.1} parent=0 // loop_footer_branch
    %11 = sbr.rel target = $region3
  $region8: #{tpu_custom_call.1} parent=0 // loop_exit
    _

</llo_original>
